<compile_context>
chip_gen: v7x
topology: tpu7x:2x2x1
jax: 0.10.0
libtpu: 0.0.40
codegen_flags: <defaults>
</compile_context>

<pallas_src>
import functools

import jax
import jax.numpy as jnp
from jax.experimental import pallas as pl
from jax.experimental.pallas import tpu as pltpu


# ------------------------------ Pallas kernel ------------------------------ #

def fused_sage_kernel(a_ref, h_ref, invdeg_ref, *rest, n_layers, f_pad,
                      split_k_proj):
    """All GraphSAGE layers in one kernel.

    Ref layout (all VMEM):
      a_ref        : A      [N, N]    exact 0/1 adjacency (mxu dtype, bf16)
      h_ref        : h      [N, F]    padded input features (mxu dtype)
      invdeg_ref   : 1/deg  [N, 1]    f32 row scale (mean aggregator)
      rest[0:L]    : W_l    [2F, F]   stacked [[W_self],[W_neigh]] per layer
      rest[L]      : b      [L, F]    stacked biases (f32)
      rest[L+1]    : out    [N, F]    output
      rest[L+2]    : hc     [N, 2F]   persistent scratch holding [h | h_neigh]
    """
    w_refs = rest[:n_layers]
    b_ref = rest[n_layers]
    o_ref = rest[n_layers + 1]
    hc_ref = rest[n_layers + 2]

    dt = hc_ref.dtype                       # MXU dtype (bf16)
    a = a_ref[...]                          # [N, N] exact 0/1 adjacency
    inv_deg = invdeg_ref[...]               # [N, 1] f32

    # Stage current activations in the left half of the concatenated scratch.
    hc_ref[:, :f_pad] = h_ref[...]

    out = None
    for l in range(n_layers):               # static unroll: n_layers is trace-time const
        h = hc_ref[:, :f_pad]               # [N, F] mxu dtype
        # Mean aggregation: exact 0/1 matmul with f32 accumulation, then the
        # 1/deg scaling applied as an f32 row-wise epilogue (keeps A exact).
        h_neigh = jnp.dot(a, h, preferred_element_type=jnp.float32) * inv_deg

        if split_k_proj:
            # v5e: 128-deep MXU -> two K=F passes cost the same as one K=2F
            # and skip the h_neigh staging store entirely.
            w = w_refs[l][...]
            out = (jnp.dot(h, w[:f_pad, :], preferred_element_type=jnp.float32)
                   + jnp.dot(h_neigh.astype(dt), w[f_pad:, :],
                             preferred_element_type=jnp.float32))
        else:
            # v6e/v7x: fill the 256-deep MXU with one K=2F matmul on the staged
            # [h | h_neigh] scratch (no concatenate materialization).
            hc_ref[:, f_pad:] = h_neigh.astype(dt)
            out = jnp.dot(hc_ref[...], w_refs[l][...],
                          preferred_element_type=jnp.float32)

        out = out + b_ref[l:l + 1, :]       # f32 bias epilogue
        if l < n_layers - 1:
            # relu + cast, written straight into the projection operand layout.
            hc_ref[:, :f_pad] = jnp.maximum(out, 0.0).astype(dt)

    o_ref[...] = out.astype(o_ref.dtype)


# ------------------------------ host wrapper ------------------------------- #

def _round_up(x, m):
    return ((x + m - 1) // m) * m


def _pad2d(x, rows, cols):
    return jnp.pad(x, ((0, rows - x.shape[0]), (0, cols - x.shape[1])))


def _use_split_k_projection():
    """True on v5e (128-deep MXU): two K=F dots instead of one K=2F."""
    try:
        kind = jax.devices()[0].device_kind.lower()
    except Exception:
        return False
    return ("v5e" in kind) or ("v5 lite" in kind) or ("v5lite" in kind)


def graphsage_forward(adj, x, params, *, mxu_dtype=jnp.bfloat16,
                      out_dtype=jnp.float32, split_k_proj=None):
    """Fused Pallas forward pass.

    adj    : [N, N] binary (0/1) adjacency, no self loops (A[i, j] = 1 iff j->i).
    x      : [N, in_feats] node features.
    params : list of (w_self, w_neigh, bias) per layer.
    """
    n, in_feats = x.shape
    n_layers = len(params)
    dims = [in_feats] + [w_s.shape[1] for (w_s, _, _) in params]
    f_pad = _round_up(max(dims), 128)       # common lane-dense feature width

    # bf16 packs 16 sublanes per vreg (32 for 8-bit types): align node count so
    # sublane handling stays unmasked.
    itemsize = jnp.dtype(mxu_dtype).itemsize
    row_align = 32 if itemsize == 1 else (16 if itemsize == 2 else 8)
    n_pad = _round_up(n, row_align)

    if split_k_proj is None:
        split_k_proj = _use_split_k_projection()

    # Mean-aggregator decomposition: keep A exact as 0/1, carry 1/deg separately.
    adj_f = adj.astype(jnp.float32)
    deg = adj_f.sum(axis=1, keepdims=True)
    inv_deg = jnp.where(deg > 0, 1.0 / jnp.maximum(deg, 1.0), 0.0)

    # Pad + pack operands once on the host side.
    a_p = _pad2d(adj_f, n_pad, n_pad).astype(mxu_dtype)           # exact 0/1 in bf16
    invdeg_p = jnp.pad(inv_deg, ((0, n_pad - n), (0, 0))).astype(jnp.float32)
    h_p = _pad2d(x, n_pad, f_pad).astype(mxu_dtype)
    w_in, b_rows = [], []
    for (w_s, w_n, b) in params:
        w_stacked = jnp.concatenate(
            [_pad2d(w_s, f_pad, f_pad), _pad2d(w_n, f_pad, f_pad)], axis=0)
        w_in.append(w_stacked.astype(mxu_dtype))                  # [2F, F]
        b_rows.append(_pad2d(b.reshape(1, -1), 1, f_pad))
    b_stacked = jnp.concatenate(b_rows, axis=0).astype(jnp.float32)  # [L, F]

    # Advisory cost hint for XLA's scheduler.
    flops = n_layers * (2 * n_pad * n_pad * f_pad + 2 * n_pad * (2 * f_pad) * f_pad)
    bytes_accessed = int(
        a_p.size * a_p.dtype.itemsize + h_p.size * h_p.dtype.itemsize
        + invdeg_p.size * 4
        + sum(w.size * w.dtype.itemsize for w in w_in)
        + b_stacked.size * 4
        + n_pad * f_pad * jnp.dtype(out_dtype).itemsize)

    kern = functools.partial(fused_sage_kernel, n_layers=n_layers, f_pad=f_pad,
                             split_k_proj=split_k_proj)
    out_pad = pl.pallas_call(
        kern,
        out_shape=jax.ShapeDtypeStruct((n_pad, f_pad), out_dtype),
        in_specs=[pl.BlockSpec(memory_space=pltpu.MemorySpace.VMEM)]
        * (3 + n_layers + 1),
        out_specs=pl.BlockSpec(memory_space=pltpu.MemorySpace.VMEM),
        scratch_shapes=[pltpu.VMEM((n_pad, 2 * f_pad), mxu_dtype)],
        cost_estimate=pl.CostEstimate(
            flops=flops, transcendentals=0, bytes_accessed=bytes_accessed),
    )(a_p, h_p, invdeg_p, *w_in, b_stacked)
    return out_pad[:n, :dims[-1]]


# --------------------------- params / reference ---------------------------- #

def init_graphsage_params(key, in_feats, n_hidden, n_classes, n_layers):
    """Xavier-uniform init matching SAGEConv's fc_self / fc_neigh, zero bias."""
    dims = [in_feats] + [n_hidden] * (n_layers - 1) + [n_classes]
    params = []
    for l in range(n_layers):
        fin, fout = dims[l], dims[l + 1]
        key, k1, k2 = jax.random.split(key, 3)
        limit = jnp.sqrt(6.0 / (fin + fout))
        w_self = jax.random.uniform(k1, (fin, fout), jnp.float32, -limit, limit)
        w_neigh = jax.random.uniform(k2, (fin, fout), jnp.float32, -limit, limit)
        b = jnp.zeros((1, fout), jnp.float32)
        params.append((w_self, w_neigh, b))
    return params


def graphsage_reference(a_mean, x, params):
    """Pure-JAX f32 reference of the same forward pass."""
    h = x
    n_layers = len(params)
    for l, (w_s, w_n, b) in enumerate(params):
        h_neigh = a_mean @ h
        out = h @ w_s + h_neigh @ w_n + b
        if l < n_layers - 1:
            out = jnp.maximum(out, 0.0)
        h = out
    return h


# ---------------------------------- main ----------------------------------- #

if __name__ == "__main__":
    N = 128            # nodes
    IN_FEATS = 32
    N_HIDDEN = 64
    N_CLASSES = 16
    N_LAYERS = 3

    key = jax.random.PRNGKey(0)
    key, k_feat, k_adj, k_par = jax.random.split(key, 4)

    # Node features.
    x = jax.random.normal(k_feat, (N, IN_FEATS), jnp.float32)

    # Random sparse-ish binary adjacency (no self loops).
    adj = (jax.random.uniform(k_adj, (N, N)) < 0.05).astype(jnp.float32)
    adj = adj * (1.0 - jnp.eye(N, dtype=jnp.float32))

    # Row-normalized adjacency (mean aggregator) for the f32 reference.
    deg = adj.sum(axis=1, keepdims=True)
    a_mean = jnp.where(deg > 0, adj / jnp.maximum(deg, 1.0), 0.0)

    # Parameters.
    params = init_graphsage_params(k_par, IN_FEATS, N_HIDDEN, N_CLASSES, N_LAYERS)

    # Fused Pallas forward (bf16 MXU operands, f32 accumulation/epilogue).
    out = graphsage_forward(adj, x, params)
    out = jax.block_until_ready(out)
    assert out.shape == (N, N_CLASSES), out.shape

    # Validate against the f32 reference (bf16 activations/weights -> loose tol).
    ref = graphsage_reference(a_mean, x, params)
    max_err = float(jnp.max(jnp.abs(out - ref)))
    scale = float(jnp.max(jnp.abs(ref))) + 1e-6
    assert max_err <= 0.08 * scale + 0.08, (
        f"mismatch vs f32 reference: max_err={max_err}, scale={scale}")

    print("KERNEL_OK")
</pallas_src>

<mosaic_0001>
module attributes {stable_mosaic.version = 11 : i64} {
  func.func @fused_sage_kernel(%arg0: memref<128x128xbf16, #tpu.memory_space<vmem>>, %arg1: memref<128x128xbf16, #tpu.memory_space<vmem>>, %arg2: memref<128x1xf32, #tpu.memory_space<vmem>>, %arg3: memref<256x128xbf16, #tpu.memory_space<vmem>>, %arg4: memref<256x128xbf16, #tpu.memory_space<vmem>>, %arg5: memref<256x128xbf16, #tpu.memory_space<vmem>>, %arg6: memref<3x128xf32, #tpu.memory_space<vmem>>, %arg7: memref<128x128xf32, #tpu.memory_space<vmem>>, %arg8: memref<128x256xbf16, #tpu.memory_space<vmem>>) attributes {dimension_semantics = [], scalar_prefetch = 0 : i64, scratch_operands = 1 : i64, tpu.core_type = #tpu.core_type<tc>} {
    %c0 = arith.constant 0 : index
    %c0_0 = arith.constant 0 : index
    %0 = vector.load %arg0[%c0, %c0_0] : memref<128x128xbf16, #tpu.memory_space<vmem>>, vector<128x128xbf16>
    %c0_1 = arith.constant 0 : index
    %c0_2 = arith.constant 0 : index
    %1 = vector.load %arg2[%c0_1, %c0_2] : memref<128x1xf32, #tpu.memory_space<vmem>>, vector<128x1xf32>
    %c0_3 = arith.constant 0 : index
    %c0_4 = arith.constant 0 : index
    %2 = vector.load %arg1[%c0_3, %c0_4] : memref<128x128xbf16, #tpu.memory_space<vmem>>, vector<128x128xbf16>
    %c0_5 = arith.constant 0 : index
    %c0_6 = arith.constant 0 : index
    %3 = vector.load %arg8[%c0_5, %c0_6] : memref<128x256xbf16, #tpu.memory_space<vmem>>, vector<128x128xbf16>
    tpu.vector_store %arg8[%c0_5, %c0_6], %2 {strides = array<i32>} : memref<128x256xbf16, #tpu.memory_space<vmem>>, vector<128x128xbf16>,
    %c0_7 = arith.constant 0 : index
    %c0_8 = arith.constant 0 : index
    %4 = vector.load %arg8[%c0_7, %c0_8] : memref<128x256xbf16, #tpu.memory_space<vmem>>, vector<128x128xbf16>
    %cst = arith.constant dense<0.000000e+00> : vector<128x128xf32>
    %5 = tpu.matmul %0, %4, %cst {dimension_numbers = #tpu.dot_dimension_numbers<[1], [0], [0], [1], [0, 0, 1, 1], [], []>} : vector<128x128xbf16>, vector<128x128xbf16>, vector<128x128xf32> -> vector<128x128xf32>
    %6 = vector.broadcast %1 : vector<128x1xf32> to vector<128x128xf32>
    %7 = arith.mulf %5, %6 : vector<128x128xf32>
    %8 = arith.truncf %7 : vector<128x128xf32> to vector<128x128xbf16>
    %c0_9 = arith.constant 0 : index
    %c128 = arith.constant 128 : index
    %9 = vector.load %arg8[%c0_9, %c128] : memref<128x256xbf16, #tpu.memory_space<vmem>>, vector<128x128xbf16>
    tpu.vector_store %arg8[%c0_9, %c128], %8 {strides = array<i32>} : memref<128x256xbf16, #tpu.memory_space<vmem>>, vector<128x128xbf16>,
    %c0_10 = arith.constant 0 : index
    %c0_11 = arith.constant 0 : index
    %10 = vector.load %arg8[%c0_10, %c0_11] : memref<128x256xbf16, #tpu.memory_space<vmem>>, vector<128x256xbf16>
    %c0_12 = arith.constant 0 : index
    %c0_13 = arith.constant 0 : index
    %11 = vector.load %arg3[%c0_12, %c0_13] : memref<256x128xbf16, #tpu.memory_space<vmem>>, vector<256x128xbf16>
    %cst_14 = arith.constant dense<0.000000e+00> : vector<128x128xf32>
    %12 = tpu.matmul %10, %11, %cst_14 {dimension_numbers = #tpu.dot_dimension_numbers<[1], [0], [0], [1], [0, 0, 1, 1], [], []>} : vector<128x256xbf16>, vector<256x128xbf16>, vector<128x128xf32> -> vector<128x128xf32>
    %c0_15 = arith.constant 0 : index
    %c0_16 = arith.constant 0 : index
    %13 = vector.load %arg6[%c0_15, %c0_16] : memref<3x128xf32, #tpu.memory_space<vmem>>, vector<1x128xf32>
    %14 = vector.broadcast %13 : vector<1x128xf32> to vector<128x128xf32>
    %15 = arith.addf %12, %14 : vector<128x128xf32>
    %cst_17 = arith.constant 0.000000e+00 : f32
    %16 = vector.broadcast %cst_17 : f32 to vector<128x128xf32>
    %17 = arith.maximumf %15, %16 : vector<128x128xf32>
    %18 = arith.truncf %17 : vector<128x128xf32> to vector<128x128xbf16>
    %c0_18 = arith.constant 0 : index
    %c0_19 = arith.constant 0 : index
    %19 = vector.load %arg8[%c0_18, %c0_19] : memref<128x256xbf16, #tpu.memory_space<vmem>>, vector<128x128xbf16>
    tpu.vector_store %arg8[%c0_18, %c0_19], %18 {strides = array<i32>} : memref<128x256xbf16, #tpu.memory_space<vmem>>, vector<128x128xbf16>,
    %c0_20 = arith.constant 0 : index
    %c0_21 = arith.constant 0 : index
    %20 = vector.load %arg8[%c0_20, %c0_21] : memref<128x256xbf16, #tpu.memory_space<vmem>>, vector<128x128xbf16>
    %cst_22 = arith.constant dense<0.000000e+00> : vector<128x128xf32>
    %21 = tpu.matmul %0, %20, %cst_22 {dimension_numbers = #tpu.dot_dimension_numbers<[1], [0], [0], [1], [0, 0, 1, 1], [], []>} : vector<128x128xbf16>, vector<128x128xbf16>, vector<128x128xf32> -> vector<128x128xf32>
    %22 = vector.broadcast %1 : vector<128x1xf32> to vector<128x128xf32>
    %23 = arith.mulf %21, %22 : vector<128x128xf32>
    %24 = arith.truncf %23 : vector<128x128xf32> to vector<128x128xbf16>
    %c0_23 = arith.constant 0 : index
    %c128_24 = arith.constant 128 : index
    %25 = vector.load %arg8[%c0_23, %c128_24] : memref<128x256xbf16, #tpu.memory_space<vmem>>, vector<128x128xbf16>
    tpu.vector_store %arg8[%c0_23, %c128_24], %24 {strides = array<i32>} : memref<128x256xbf16, #tpu.memory_space<vmem>>, vector<128x128xbf16>,
    %c0_25 = arith.constant 0 : index
    %c0_26 = arith.constant 0 : index
    %26 = vector.load %arg8[%c0_25, %c0_26] : memref<128x256xbf16, #tpu.memory_space<vmem>>, vector<128x256xbf16>
    %c0_27 = arith.constant 0 : index
    %c0_28 = arith.constant 0 : index
    %27 = vector.load %arg4[%c0_27, %c0_28] : memref<256x128xbf16, #tpu.memory_space<vmem>>, vector<256x128xbf16>
    %cst_29 = arith.constant dense<0.000000e+00> : vector<128x128xf32>
    %28 = tpu.matmul %26, %27, %cst_29 {dimension_numbers = #tpu.dot_dimension_numbers<[1], [0], [0], [1], [0, 0, 1, 1], [], []>} : vector<128x256xbf16>, vector<256x128xbf16>, vector<128x128xf32> -> vector<128x128xf32>
    %c1 = arith.constant 1 : index
    %c0_30 = arith.constant 0 : index
    %29 = vector.load %arg6[%c1, %c0_30] : memref<3x128xf32, #tpu.memory_space<vmem>>, vector<1x128xf32>
    %30 = vector.broadcast %29 : vector<1x128xf32> to vector<128x128xf32>
    %31 = arith.addf %28, %30 : vector<128x128xf32>
    %cst_31 = arith.constant 0.000000e+00 : f32
    %32 = vector.broadcast %cst_31 : f32 to vector<128x128xf32>
    %33 = arith.maximumf %31, %32 : vector<128x128xf32>
    %34 = arith.truncf %33 : vector<128x128xf32> to vector<128x128xbf16>
    %c0_32 = arith.constant 0 : index
    %c0_33 = arith.constant 0 : index
    %35 = vector.load %arg8[%c0_32, %c0_33] : memref<128x256xbf16, #tpu.memory_space<vmem>>, vector<128x128xbf16>
    tpu.vector_store %arg8[%c0_32, %c0_33], %34 {strides = array<i32>} : memref<128x256xbf16, #tpu.memory_space<vmem>>, vector<128x128xbf16>,
    %c0_34 = arith.constant 0 : index
    %c0_35 = arith.constant 0 : index
    %36 = vector.load %arg8[%c0_34, %c0_35] : memref<128x256xbf16, #tpu.memory_space<vmem>>, vector<128x128xbf16>
    %cst_36 = arith.constant dense<0.000000e+00> : vector<128x128xf32>
    %37 = tpu.matmul %0, %36, %cst_36 {dimension_numbers = #tpu.dot_dimension_numbers<[1], [0], [0], [1], [0, 0, 1, 1], [], []>} : vector<128x128xbf16>, vector<128x128xbf16>, vector<128x128xf32> -> vector<128x128xf32>
    %38 = vector.broadcast %1 : vector<128x1xf32> to vector<128x128xf32>
    %39 = arith.mulf %37, %38 : vector<128x128xf32>
    %40 = arith.truncf %39 : vector<128x128xf32> to vector<128x128xbf16>
    %c0_37 = arith.constant 0 : index
    %c128_38 = arith.constant 128 : index
    %41 = vector.load %arg8[%c0_37, %c128_38] : memref<128x256xbf16, #tpu.memory_space<vmem>>, vector<128x128xbf16>
    tpu.vector_store %arg8[%c0_37, %c128_38], %40 {strides = array<i32>} : memref<128x256xbf16, #tpu.memory_space<vmem>>, vector<128x128xbf16>,
    %c0_39 = arith.constant 0 : index
    %c0_40 = arith.constant 0 : index
    %42 = vector.load %arg8[%c0_39, %c0_40] : memref<128x256xbf16, #tpu.memory_space<vmem>>, vector<128x256xbf16>
    %c0_41 = arith.constant 0 : index
    %c0_42 = arith.constant 0 : index
    %43 = vector.load %arg5[%c0_41, %c0_42] : memref<256x128xbf16, #tpu.memory_space<vmem>>, vector<256x128xbf16>
    %cst_43 = arith.constant dense<0.000000e+00> : vector<128x128xf32>
    %44 = tpu.matmul %42, %43, %cst_43 {dimension_numbers = #tpu.dot_dimension_numbers<[1], [0], [0], [1], [0, 0, 1, 1], [], []>} : vector<128x256xbf16>, vector<256x128xbf16>, vector<128x128xf32> -> vector<128x128xf32>
    %c2 = arith.constant 2 : index
    %c0_44 = arith.constant 0 : index
    %45 = vector.load %arg6[%c2, %c0_44] : memref<3x128xf32, #tpu.memory_space<vmem>>, vector<1x128xf32>
    %46 = vector.broadcast %45 : vector<1x128xf32> to vector<128x128xf32>
    %47 = arith.addf %44, %46 : vector<128x128xf32>
    %c0_45 = arith.constant 0 : index
    %c0_46 = arith.constant 0 : index
    %48 = vector.load %arg7[%c0_45, %c0_46] : memref<128x128xf32, #tpu.memory_space<vmem>>, vector<128x128xf32>
    tpu.vector_store %arg7[%c0_45, %c0_46], %47 {strides = array<i32>} : memref<128x128xf32, #tpu.memory_space<vmem>>, vector<128x128xf32>,
    return
  }
}

</mosaic_0001>

<llo_original>
// kernel: tpu_custom_call.1
$region0: #{tpu_custom_call.1}
  #allocation0 [shape = 'u32[]', space=smem, size = 0x4, offset = 0x4, fixed_abs, tag = 'smem constant byte address 0x4 - core index']
  #allocation1 [shape = 'u32[144,128]{1,0:T(1,128)}', space=vmem, size = 0x12000, scoped, tag = 'internal scratch']
  #allocation2 [shape = 'bf16[128,256]{1,0:T(16,128)(2,1)}', space=vmem, size = 0x10000, scoped, tag = 'scratch operand']
  %s0 = inlined_call_operand.hbm [shape: bf16[128,128], index: 0, kind: input, shape index: {}]
  %s1 = inlined_call_operand.hbm [shape: bf16[128,128], index: 1, kind: input, shape index: {}]
  %s2 = inlined_call_operand.vmem [shape: f32[128,1], index: 2, kind: input, shape index: {}]
  %s3 = inlined_call_operand.vmem [shape: bf16[256,128], index: 3, kind: input, shape index: {}]
  %s4 = inlined_call_operand.hbm [shape: bf16[256,128], index: 4, kind: input, shape index: {}]
  %s5 = inlined_call_operand.hbm [shape: bf16[256,128], index: 5, kind: input, shape index: {}]
  %s6 = inlined_call_operand.vmem [shape: f32[3,128], index: 6, kind: input, shape index: {}]
  %s7 = inlined_call_operand.hbm [shape: f32[128,128], index: 7, kind: output, shape index: {}]
  %s8 = sld [smem:[#allocation0]]
  $region54: #{tpu_custom_call.1} parent=0
    _
  %s10 = ssub.s32 1, %s8
  %s11 = scalar_select 0, %s10, %s8
  $region1: #{tpu_custom_call.1} parent=0
    #allocation3 [shape = 'u8[32768]{0}', space=vmem, size = 0x8000, scoped, tag = 'input window, operand 0, single buffered']
    #allocation4 [shape = 's32[1]{0}', space=sflag, size = 0x4, scoped, tag = 'scoped memory for tpu_custom_call.1']
    #allocation5 [shape = 's32[1]{0}', space=sflag, size = 0x4, scoped, tag = 'scoped memory for tpu_custom_call.1']
    #allocation6 [shape = 'u8[32768]{0}', space=vmem, size = 0x8000, scoped, tag = 'input window, operand 1, single buffered']
    #allocation7 [shape = 's32[1]{0}', space=sflag, size = 0x4, scoped, tag = 'scoped memory for tpu_custom_call.1']
    #allocation8 [shape = 'u8[65536]{0}', space=vmem, size = 0x10000, scoped, tag = 'input window, operand 4, single buffered']
    #allocation9 [shape = 'u8[65536]{0}', space=vmem, size = 0x10000, scoped, tag = 'input window, operand 5, single buffered']
    #allocation10 [shape = 's32[1]{0}', space=sflag, size = 0x4, scoped, tag = 'scoped memory for tpu_custom_call.1']
    #allocation11 [shape = 'u8[65536]{0}', space=vmem, size = 0x10000, scoped, tag = 'output window, operand 0, single buffered']
    %12 = vsyncpa [#allocation4], 0
    %13 = vsyncpa [#allocation7], 0
    %14 = vsyncpa [#allocation10], 0
    %15 = vsyncpa [#allocation5], 0
    // Predicated region
    $region2: #{tpu_custom_call.1} parent=1 // pred_check
      _
    $region3: #{tpu_custom_call.1} parent=1 // pred_check_branch
      %17 = sbr.rel (0) target = $region5
    $region4: #{tpu_custom_call.1} parent=1 // pred_region
      %s19 = ssub.s32 1024, 1024
      %20 = vsyncadd [#allocation4], %s19
      %s21 = sshll.u32 [#allocation3], 4
      %s22 = int_to_ptr.vmem [resolvable:$true] %s21
      %27 = dma.hbm_to_vmem [thread:$0]  %s0, 1024, %s22, [#allocation4], 64, 64, 4
    $region5: #{tpu_custom_call.1} parent=1 // pred_fallthru
      _
    // Predicated region
    $region6: #{tpu_custom_call.1} parent=1 // pred_check
      _
    $region7: #{tpu_custom_call.1} parent=1 // pred_check_branch
      %29 = sbr.rel (0) target = $region9
    $region8: #{tpu_custom_call.1} parent=1 // pred_region
      %s31 = ssub.s32 1024, 1024
      %32 = vsyncadd [#allocation7], %s31
      %s33 = sshll.u32 [#allocation6], 4
      %s34 = int_to_ptr.vmem [resolvable:$true] %s33
      %39 = dma.hbm_to_vmem [thread:$0]  %s1, 1024, %s34, [#allocation7], 64, 64, 4
    $region9: #{tpu_custom_call.1} parent=1 // pred_fallthru
      _
    // Predicated region
    $region10: #{tpu_custom_call.1} parent=1 // pred_check
      _
    $region11: #{tpu_custom_call.1} parent=1 // pred_check_branch
      %41 = sbr.rel (0) target = $region13
    $region12: #{tpu_custom_call.1} parent=1 // pred_region
      _
    $region13: #{tpu_custom_call.1} parent=1 // pred_fallthru
      _
    // Predicated region
    $region14: #{tpu_custom_call.1} parent=1 // pred_check
      _
    $region15: #{tpu_custom_call.1} parent=1 // pred_check_branch
      %43 = sbr.rel (0) target = $region17
    $region16: #{tpu_custom_call.1} parent=1 // pred_region
      _
    $region17: #{tpu_custom_call.1} parent=1 // pred_fallthru
      _
    // Predicated region
    $region18: #{tpu_custom_call.1} parent=1 // pred_check
      _
    $region19: #{tpu_custom_call.1} parent=1 // pred_check_branch
      %45 = sbr.rel (0) target = $region21
    $region20: #{tpu_custom_call.1} parent=1 // pred_region
      %s47 = ssub.s32 2048, 2048
      %48 = vsyncadd [#allocation7], %s47
      %s49 = sshll.u32 [#allocation8], 4
      %s50 = int_to_ptr.vmem [resolvable:$true] %s49
      %55 = dma.hbm_to_vmem [thread:$0]  %s4, 2048, %s50, [#allocation7], 64, 64, 4
    $region21: #{tpu_custom_call.1} parent=1 // pred_fallthru
      _
    // Predicated region
    $region22: #{tpu_custom_call.1} parent=1 // pred_check
      _
    $region23: #{tpu_custom_call.1} parent=1 // pred_check_branch
      %57 = sbr.rel (0) target = $region25
    $region24: #{tpu_custom_call.1} parent=1 // pred_region
      %s59 = ssub.s32 2048, 2048
      %60 = vsyncadd [#allocation10], %s59
      %s61 = sshll.u32 [#allocation9], 4
      %s62 = int_to_ptr.vmem [resolvable:$true] %s61
      %67 = dma.hbm_to_vmem [thread:$0]  %s5, 2048, %s62, [#allocation10], 64, 64, 4
    $region25: #{tpu_custom_call.1} parent=1 // pred_fallthru
      _
    // Predicated region
    $region26: #{tpu_custom_call.1} parent=1 // pred_check
      _
    $region27: #{tpu_custom_call.1} parent=1 // pred_check_branch
      %69 = sbr.rel (0) target = $region29
    $region28: #{tpu_custom_call.1} parent=1 // pred_region
      _
    $region29: #{tpu_custom_call.1} parent=1 // pred_fallthru
      _
    // Predicated region
    $region30: #{tpu_custom_call.1} parent=1 // pred_check
      _
    $region31: #{tpu_custom_call.1} parent=1 // pred_check_branch
      %71 = sbr.rel (0) target = $region33
    $region32: #{tpu_custom_call.1} parent=1 // pred_region
      %72 = dma.done [#allocation4], 1024
    $region33: #{tpu_custom_call.1} parent=1 // pred_fallthru
      _
    // Predicated region
    $region34: #{tpu_custom_call.1} parent=1 // pred_check
      _
    $region35: #{tpu_custom_call.1} parent=1 // pred_check_branch
      %74 = sbr.rel (0) target = $region37
    $region36: #{tpu_custom_call.1} parent=1 // pred_region
      %75 = dma.done [#allocation7], 1024
    $region37: #{tpu_custom_call.1} parent=1 // pred_fallthru
      _
    // Predicated region
    $region38: #{tpu_custom_call.1} parent=1 // pred_check
      _
    $region39: #{tpu_custom_call.1} parent=1 // pred_check_branch
      %77 = sbr.rel (0) target = $region41
    $region40: #{tpu_custom_call.1} parent=1 // pred_region
      %78 = dma.done [#allocation7], 2048
    $region41: #{tpu_custom_call.1} parent=1 // pred_fallthru
      _
    // Predicated region
    $region42: #{tpu_custom_call.1} parent=1 // pred_check
      _
    $region43: #{tpu_custom_call.1} parent=1 // pred_check_branch
      %80 = sbr.rel (0) target = $region45
    $region44: #{tpu_custom_call.1} parent=1 // pred_region
      %81 = dma.done [#allocation10], 2048
    $region45: #{tpu_custom_call.1} parent=1 // pred_fallthru
      _
    %v83 = vld [vmem:[#allocation3] sm:$0xf]
    %v84 = vld [vmem:[#allocation3 + $0x4] sm:$0xf]
    %v85 = vld [vmem:[#allocation3 + $0x8] sm:$0xf]
    %v86 = vld [vmem:[#allocation3 + $0xc] sm:$0xf]
    %v87 = vld [vmem:[#allocation3 + $0x10] sm:$0xf]
    %v88 = vld [vmem:[#allocation3 + $0x14] sm:$0xf]
    %v89 = vld [vmem:[#allocation3 + $0x18] sm:$0xf]
    %v90 = vld [vmem:[#allocation3 + $0x1c] sm:$0xf]
    %v91 = vld [vmem:[#allocation3 + $0x20] sm:$0xf]
    %v92 = vld [vmem:[#allocation3 + $0x24] sm:$0xf]
    %v93 = vld [vmem:[#allocation3 + $0x28] sm:$0xf]
    %v94 = vld [vmem:[#allocation3 + $0x2c] sm:$0xf]
    %v95 = vld [vmem:[#allocation3 + $0x30] sm:$0xf]
    %v96 = vld [vmem:[#allocation3 + $0x34] sm:$0xf]
    %v97 = vld [vmem:[#allocation3 + $0x38] sm:$0xf]
    %v98 = vld [vmem:[#allocation3 + $0x3c] sm:$0xf]
    %v99 = vld [vmem:[%s2] sm:$0xff]
    %v100 = vld [vmem:[%s2 + $0x8] sm:$0xff]
    %v101 = vld [vmem:[%s2 + $0x10] sm:$0xff]
    %v102 = vld [vmem:[%s2 + $0x18] sm:$0xff]
    %v103 = vld [vmem:[%s2 + $0x20] sm:$0xff]
    %v104 = vld [vmem:[%s2 + $0x28] sm:$0xff]
    %v105 = vld [vmem:[%s2 + $0x30] sm:$0xff]
    %v106 = vld [vmem:[%s2 + $0x38] sm:$0xff]
    %v107 = vld [vmem:[%s2 + $0x40] sm:$0xff]
    %v108 = vld [vmem:[%s2 + $0x48] sm:$0xff]
    %v109 = vld [vmem:[%s2 + $0x50] sm:$0xff]
    %v110 = vld [vmem:[%s2 + $0x58] sm:$0xff]
    %v111 = vld [vmem:[%s2 + $0x60] sm:$0xff]
    %v112 = vld [vmem:[%s2 + $0x68] sm:$0xff]
    %v113 = vld [vmem:[%s2 + $0x70] sm:$0xff]
    %v114 = vld [vmem:[%s2 + $0x78] sm:$0xff]
    %v115 = vld [vmem:[#allocation6] sm:$0xf]
    %v116 = vld [vmem:[#allocation6 + $0x4] sm:$0xf]
    %v117 = vld [vmem:[#allocation6 + $0x8] sm:$0xf]
    %v118 = vld [vmem:[#allocation6 + $0xc] sm:$0xf]
    %v119 = vld [vmem:[#allocation6 + $0x10] sm:$0xf]
    %v120 = vld [vmem:[#allocation6 + $0x14] sm:$0xf]
    %v121 = vld [vmem:[#allocation6 + $0x18] sm:$0xf]
    %v122 = vld [vmem:[#allocation6 + $0x1c] sm:$0xf]
    %v123 = vld [vmem:[#allocation6 + $0x20] sm:$0xf]
    %v124 = vld [vmem:[#allocation6 + $0x24] sm:$0xf]
    %v125 = vld [vmem:[#allocation6 + $0x28] sm:$0xf]
    %v126 = vld [vmem:[#allocation6 + $0x2c] sm:$0xf]
    %v127 = vld [vmem:[#allocation6 + $0x30] sm:$0xf]
    %v128 = vld [vmem:[#allocation6 + $0x34] sm:$0xf]
    %v129 = vld [vmem:[#allocation6 + $0x38] sm:$0xf]
    %v130 = vld [vmem:[#allocation6 + $0x3c] sm:$0xf]
    %v147 = vunpack.c.l.b16 %v115
    %v148 = vunpack.c.l.b16 %v116
    %v149 = vunpack.c.l.b16 %v117
    %v150 = vunpack.c.l.b16 %v118
    %v151 = vunpack.c.l.b16 %v119
    %v152 = vunpack.c.l.b16 %v120
    %v153 = vunpack.c.l.b16 %v121
    %v154 = vunpack.c.l.b16 %v122
    %v155 = vunpack.c.l.b16 %v123
    %v156 = vunpack.c.l.b16 %v124
    %v157 = vunpack.c.l.b16 %v125
    %v158 = vunpack.c.l.b16 %v126
    %v159 = vunpack.c.l.b16 %v127
    %v160 = vunpack.c.l.b16 %v128
    %v161 = vunpack.c.l.b16 %v129
    %v162 = vunpack.c.l.b16 %v130
    %v163 = vpack.c.b16 %v148, %v147
    %v164 = vpack.c.b16 %v150, %v149
    %v165 = vpack.c.b16 %v152, %v151
    %v166 = vpack.c.b16 %v154, %v153
    %v167 = vpack.c.b16 %v156, %v155
    %v168 = vpack.c.b16 %v158, %v157
    %v169 = vpack.c.b16 %v160, %v159
    %v170 = vpack.c.b16 %v162, %v161
    %179 = vst [vmem:[#allocation2] sm:$0xff] %v163
    %180 = vst [vmem:[#allocation2 + $0x10] sm:$0xff] %v164
    %181 = vst [vmem:[#allocation2 + $0x20] sm:$0xff] %v165
    %182 = vst [vmem:[#allocation2 + $0x30] sm:$0xff] %v166
    %183 = vst [vmem:[#allocation2 + $0x40] sm:$0xff] %v167
    %184 = vst [vmem:[#allocation2 + $0x50] sm:$0xff] %v168
    %185 = vst [vmem:[#allocation2 + $0x60] sm:$0xff] %v169
    %186 = vst [vmem:[#allocation2 + $0x70] sm:$0xff] %v170
    %v187 = vld [vmem:[#allocation2] sm:$0xff]
    %v188 = vld [vmem:[#allocation2 + $0x10] sm:$0xff]
    %v189 = vld [vmem:[#allocation2 + $0x20] sm:$0xff]
    %v190 = vld [vmem:[#allocation2 + $0x30] sm:$0xff]
    %v191 = vld [vmem:[#allocation2 + $0x40] sm:$0xff]
    %v192 = vld [vmem:[#allocation2 + $0x50] sm:$0xff]
    %v193 = vld [vmem:[#allocation2 + $0x60] sm:$0xff]
    %v194 = vld [vmem:[#allocation2 + $0x70] sm:$0xff]
    %v211 = vunpack.c.l.b16 %v83
    %v212 = vunpack.c.l.b16 %v84
    %v213 = vunpack.c.l.b16 %v85
    %v214 = vunpack.c.l.b16 %v86
    %v215 = vunpack.c.l.b16 %v87
    %v216 = vunpack.c.l.b16 %v88
    %v217 = vunpack.c.l.b16 %v89
    %v218 = vunpack.c.l.b16 %v90
    %v219 = vunpack.c.l.b16 %v91
    %v220 = vunpack.c.l.b16 %v92
    %v221 = vunpack.c.l.b16 %v93
    %v222 = vunpack.c.l.b16 %v94
    %v223 = vunpack.c.l.b16 %v95
    %v224 = vunpack.c.l.b16 %v96
    %v225 = vunpack.c.l.b16 %v97
    %v226 = vunpack.c.l.b16 %v98
    %v227 = vpack.c.b16 %v212, %v211
    %v228 = vpack.c.b16 %v214, %v213
    %v229 = vpack.c.b16 %v216, %v215
    %v230 = vpack.c.b16 %v218, %v217
    %v231 = vpack.c.b16 %v220, %v219
    %v232 = vpack.c.b16 %v222, %v221
    %v233 = vpack.c.b16 %v224, %v223
    %v234 = vpack.c.b16 %v226, %v225
    %243 = vmatprep.subr.bf16.mxu0 0
    %244 = vmatpush1.bf16.msra.mxu0 %v187
    %245 = vmatprep.subr.bf16.mxu0 0
    %246 = vmatpush1.bf16.msra.mxu0 %v188
    %247 = vmatprep.subr.bf16.mxu0 0
    %248 = vmatpush1.bf16.msra.mxu0 %v189
    %249 = vmatprep.subr.bf16.mxu0 0
    %250 = vmatpush1.bf16.msra.mxu0 %v190
    %251 = vmatprep.subr.bf16.mxu0 0
    %252 = vmatpush1.bf16.msra.mxu0 %v191
    %253 = vmatprep.subr.bf16.mxu0 0
    %254 = vmatpush1.bf16.msra.mxu0 %v192
    %255 = vmatprep.subr.bf16.mxu0 0
    %256 = vmatpush1.bf16.msra.mxu0 %v193
    %257 = vmatprep.subr.bf16.mxu0 0
    %258 = vmatpush1.bf16.msra.mxu0 %v194
    %259 = vmatprep.subr.bf16.mxu0 0
    %260 = vmatpush1.bf16.msra.mxu0 0
    %261 = vmatprep.subr.bf16.mxu0 0
    %262 = vmatpush1.bf16.msra.mxu0 0
    %263 = vmatprep.subr.bf16.mxu0 0
    %264 = vmatpush1.bf16.msra.mxu0 0
    %265 = vmatprep.subr.bf16.mxu0 0
    %266 = vmatpush1.bf16.msra.mxu0 0
    %267 = vmatprep.subr.bf16.mxu0 0
    %268 = vmatpush1.bf16.msra.mxu0 0
    %269 = vmatprep.subr.bf16.mxu0 0
    %270 = vmatpush1.bf16.msra.mxu0 0
    %271 = vmatprep.subr.bf16.mxu0 0
    %272 = vmatpush1.bf16.msra.mxu0 0
    %273 = vmatprep.subr.bf16.mxu0 0
    %274 = vmatpush1.bf16.msra.mxu0 0
    %275 = vmatprep.mubr.bf16.mxu0 0
    %276 = vmatmul.mubr.bf16.gmra.mrb[0].mxu0 %v227
    %v277 = vpop.f32.mrb[0].mxu0
    %v278 = vadd.f32 0.0, %v277
    %v279 = vpop.f32.mrb[0].mxu0
    %v280 = vpop.f32.mrb[0].mxu0
    %v281 = vadd.f32 0.0, %v280
    %v282 = vpop.f32.mrb[0].mxu0
    %283 = vmatprep.mubr.bf16.mxu0 0
    %284 = vmatmul.mubr.bf16.gmra.mrb[0].mxu0 %v228
    %v285 = vpop.f32.mrb[0].mxu0
    %v286 = vadd.f32 0.0, %v285
    %v287 = vpop.f32.mrb[0].mxu0
    %v288 = vpop.f32.mrb[0].mxu0
    %v289 = vadd.f32 0.0, %v288
    %v290 = vpop.f32.mrb[0].mxu0
    %291 = vmatprep.mubr.bf16.mxu0 0
    %292 = vmatmul.mubr.bf16.gmra.mrb[0].mxu0 %v229
    %v293 = vpop.f32.mrb[0].mxu0
    %v294 = vadd.f32 0.0, %v293
    %v295 = vpop.f32.mrb[0].mxu0
    %v296 = vpop.f32.mrb[0].mxu0
    %v297 = vadd.f32 0.0, %v296
    %v298 = vpop.f32.mrb[0].mxu0
    %299 = vmatprep.mubr.bf16.mxu0 0
    %300 = vmatmul.mubr.bf16.gmra.mrb[0].mxu0 %v230
    %v301 = vpop.f32.mrb[0].mxu0
    %v302 = vadd.f32 0.0, %v301
    %v303 = vpop.f32.mrb[0].mxu0
    %v304 = vpop.f32.mrb[0].mxu0
    %v305 = vadd.f32 0.0, %v304
    %v306 = vpop.f32.mrb[0].mxu0
    %307 = vmatprep.mubr.bf16.mxu0 0
    %308 = vmatmul.mubr.bf16.gmra.mrb[0].mxu0 %v231
    %v309 = vpop.f32.mrb[0].mxu0
    %v310 = vadd.f32 0.0, %v309
    %v311 = vpop.f32.mrb[0].mxu0
    %v312 = vpop.f32.mrb[0].mxu0
    %v313 = vadd.f32 0.0, %v312
    %v314 = vpop.f32.mrb[0].mxu0
    %315 = vmatprep.mubr.bf16.mxu0 0
    %316 = vmatmul.mubr.bf16.gmra.mrb[0].mxu0 %v232
    %v317 = vpop.f32.mrb[0].mxu0
    %v318 = vadd.f32 0.0, %v317
    %v319 = vpop.f32.mrb[0].mxu0
    %v320 = vpop.f32.mrb[0].mxu0
    %v321 = vadd.f32 0.0, %v320
    %v322 = vpop.f32.mrb[0].mxu0
    %323 = vmatprep.mubr.bf16.mxu0 0
    %324 = vmatmul.mubr.bf16.gmra.mrb[0].mxu0 %v233
    %v325 = vpop.f32.mrb[0].mxu0
    %v326 = vadd.f32 0.0, %v325
    %v327 = vpop.f32.mrb[0].mxu0
    %v328 = vpop.f32.mrb[0].mxu0
    %v329 = vadd.f32 0.0, %v328
    %v330 = vpop.f32.mrb[0].mxu0
    %331 = vmatprep.mubr.bf16.mxu0 0
    %332 = vmatmul.mubr.bf16.gmra.mrb[0].mxu0 %v234
    %v333 = vpop.f32.mrb[0].mxu0
    %v334 = vadd.f32 0.0, %v333
    %v335 = vpop.f32.mrb[0].mxu0
    %v336 = vpop.f32.mrb[0].mxu0
    %v337 = vadd.f32 0.0, %v336
    %v338 = vpop.f32.mrb[0].mxu0
    %339 = vdwg.mxu0
    %341 = vset.pattern.permute.xlu0 0
    %342 = vperm.xlu0 %341, %v99
    %v343 = vpop.permute.xlu0 %342
    %346 = vset.pattern.permute.xlu0 0
    %347 = vperm.xlu0 %346, %v100
    %v348 = vpop.permute.xlu0 %347
    %351 = vset.pattern.permute.xlu0 0
    %352 = vperm.xlu0 %351, %v101
    %v353 = vpop.permute.xlu0 %352
    %356 = vset.pattern.permute.xlu0 0
    %357 = vperm.xlu0 %356, %v102
    %v358 = vpop.permute.xlu0 %357
    %361 = vset.pattern.permute.xlu0 0
    %362 = vperm.xlu0 %361, %v103
    %v363 = vpop.permute.xlu0 %362
    %366 = vset.pattern.permute.xlu0 0
    %367 = vperm.xlu0 %366, %v104
    %v368 = vpop.permute.xlu0 %367
    %371 = vset.pattern.permute.xlu0 0
    %372 = vperm.xlu0 %371, %v105
    %v373 = vpop.permute.xlu0 %372
    %376 = vset.pattern.permute.xlu0 0
    %377 = vperm.xlu0 %376, %v106
    %v378 = vpop.permute.xlu0 %377
    %381 = vset.pattern.permute.xlu0 0
    %382 = vperm.xlu0 %381, %v107
    %v383 = vpop.permute.xlu0 %382
    %386 = vset.pattern.permute.xlu0 0
    %387 = vperm.xlu0 %386, %v108
    %v388 = vpop.permute.xlu0 %387
    %391 = vset.pattern.permute.xlu0 0
    %392 = vperm.xlu0 %391, %v109
    %v393 = vpop.permute.xlu0 %392
    %396 = vset.pattern.permute.xlu0 0
    %397 = vperm.xlu0 %396, %v110
    %v398 = vpop.permute.xlu0 %397
    %401 = vset.pattern.permute.xlu0 0
    %402 = vperm.xlu0 %401, %v111
    %v403 = vpop.permute.xlu0 %402
    %406 = vset.pattern.permute.xlu0 0
    %407 = vperm.xlu0 %406, %v112
    %v408 = vpop.permute.xlu0 %407
    %411 = vset.pattern.permute.xlu0 0
    %412 = vperm.xlu0 %411, %v113
    %v413 = vpop.permute.xlu0 %412
    %416 = vset.pattern.permute.xlu0 0
    %417 = vperm.xlu0 %416, %v114
    %v418 = vpop.permute.xlu0 %417
    %v420 = vmul.f32 %v278, %v343
    %v421 = vmul.f32 %v281, %v348
    %v422 = vmul.f32 %v286, %v353
    %v423 = vmul.f32 %v289, %v358
    %v424 = vmul.f32 %v294, %v363
    %v425 = vmul.f32 %v297, %v368
    %v426 = vmul.f32 %v302, %v373
    %v427 = vmul.f32 %v305, %v378
    %v428 = vmul.f32 %v310, %v383
    %v429 = vmul.f32 %v313, %v388
    %v430 = vmul.f32 %v318, %v393
    %v431 = vmul.f32 %v321, %v398
    %v432 = vmul.f32 %v326, %v403
    %v433 = vmul.f32 %v329, %v408
    %v434 = vmul.f32 %v334, %v413
    %v435 = vmul.f32 %v337, %v418
    %v436 = vpack.c.bf16 %v421, %v420
    %v437 = vpack.c.bf16 %v423, %v422
    %v438 = vpack.c.bf16 %v425, %v424
    %v439 = vpack.c.bf16 %v427, %v426
    %v440 = vpack.c.bf16 %v429, %v428
    %v441 = vpack.c.bf16 %v431, %v430
    %v442 = vpack.c.bf16 %v433, %v432
    %v443 = vpack.c.bf16 %v435, %v434
    %444 = vst [vmem:[#allocation2 + $0x8] sm:$0xff] %v436
    %445 = vst [vmem:[#allocation2 + $0x18] sm:$0xff] %v437
    %446 = vst [vmem:[#allocation2 + $0x28] sm:$0xff] %v438
    %447 = vst [vmem:[#allocation2 + $0x38] sm:$0xff] %v439
    %448 = vst [vmem:[#allocation2 + $0x48] sm:$0xff] %v440
    %449 = vst [vmem:[#allocation2 + $0x58] sm:$0xff] %v441
    %450 = vst [vmem:[#allocation2 + $0x68] sm:$0xff] %v442
    %451 = vst [vmem:[#allocation2 + $0x78] sm:$0xff] %v443
    %v452 = vld [vmem:[#allocation2] sm:$0xff]
    %v453 = vld [vmem:[#allocation2 + $0x8] sm:$0xff]
    %v454 = vld [vmem:[#allocation2 + $0x10] sm:$0xff]
    %v455 = vld [vmem:[#allocation2 + $0x18] sm:$0xff]
    %v456 = vld [vmem:[#allocation2 + $0x20] sm:$0xff]
    %v457 = vld [vmem:[#allocation2 + $0x28] sm:$0xff]
    %v458 = vld [vmem:[#allocation2 + $0x30] sm:$0xff]
    %v459 = vld [vmem:[#allocation2 + $0x38] sm:$0xff]
    %v460 = vld [vmem:[#allocation2 + $0x40] sm:$0xff]
    %v461 = vld [vmem:[#allocation2 + $0x48] sm:$0xff]
    %v462 = vld [vmem:[#allocation2 + $0x50] sm:$0xff]
    %v463 = vld [vmem:[#allocation2 + $0x58] sm:$0xff]
    %v464 = vld [vmem:[#allocation2 + $0x60] sm:$0xff]
    %v465 = vld [vmem:[#allocation2 + $0x68] sm:$0xff]
    %v466 = vld [vmem:[#allocation2 + $0x70] sm:$0xff]
    %v467 = vld [vmem:[#allocation2 + $0x78] sm:$0xff]
    %v468 = vld [vmem:[%s3] sm:$0xf]
    %v469 = vld [vmem:[%s3 + $0x4] sm:$0xf]
    %v470 = vld [vmem:[%s3 + $0x8] sm:$0xf]
    %v471 = vld [vmem:[%s3 + $0xc] sm:$0xf]
    %v472 = vld [vmem:[%s3 + $0x10] sm:$0xf]
    %v473 = vld [vmem:[%s3 + $0x14] sm:$0xf]
    %v474 = vld [vmem:[%s3 + $0x18] sm:$0xf]
    %v475 = vld [vmem:[%s3 + $0x1c] sm:$0xf]
    %v476 = vld [vmem:[%s3 + $0x20] sm:$0xf]
    %v477 = vld [vmem:[%s3 + $0x24] sm:$0xf]
    %v478 = vld [vmem:[%s3 + $0x28] sm:$0xf]
    %v479 = vld [vmem:[%s3 + $0x2c] sm:$0xf]
    %v480 = vld [vmem:[%s3 + $0x30] sm:$0xf]
    %v481 = vld [vmem:[%s3 + $0x34] sm:$0xf]
    %v482 = vld [vmem:[%s3 + $0x38] sm:$0xf]
    %v483 = vld [vmem:[%s3 + $0x3c] sm:$0xf]
    %v484 = vld [vmem:[%s3 + $0x40] sm:$0xf]
    %v485 = vld [vmem:[%s3 + $0x44] sm:$0xf]
    %v486 = vld [vmem:[%s3 + $0x48] sm:$0xf]
    %v487 = vld [vmem:[%s3 + $0x4c] sm:$0xf]
    %v488 = vld [vmem:[%s3 + $0x50] sm:$0xf]
    %v489 = vld [vmem:[%s3 + $0x54] sm:$0xf]
    %v490 = vld [vmem:[%s3 + $0x58] sm:$0xf]
    %v491 = vld [vmem:[%s3 + $0x5c] sm:$0xf]
    %v492 = vld [vmem:[%s3 + $0x60] sm:$0xf]
    %v493 = vld [vmem:[%s3 + $0x64] sm:$0xf]
    %v494 = vld [vmem:[%s3 + $0x68] sm:$0xf]
    %v495 = vld [vmem:[%s3 + $0x6c] sm:$0xf]
    %v496 = vld [vmem:[%s3 + $0x70] sm:$0xf]
    %v497 = vld [vmem:[%s3 + $0x74] sm:$0xf]
    %v498 = vld [vmem:[%s3 + $0x78] sm:$0xf]
    %v499 = vld [vmem:[%s3 + $0x7c] sm:$0xf]
    %v500 = vld [vmem:[%s6] sm:$0x1]
    %v501 = vlaneseq
    %v502 = vshrl.u32 %v501, 7
    %v503 = vsub.s32 0, %v502
    %v504 = vrot.slane %v500, %v503
    %v537 = vunpack.c.l.b16 %v468
    %v538 = vunpack.c.l.b16 %v469
    %v539 = vunpack.c.l.b16 %v470
    %v540 = vunpack.c.l.b16 %v471
    %v541 = vunpack.c.l.b16 %v472
    %v542 = vunpack.c.l.b16 %v473
    %v543 = vunpack.c.l.b16 %v474
    %v544 = vunpack.c.l.b16 %v475
    %v545 = vunpack.c.l.b16 %v476
    %v546 = vunpack.c.l.b16 %v477
    %v547 = vunpack.c.l.b16 %v478
    %v548 = vunpack.c.l.b16 %v479
    %v549 = vunpack.c.l.b16 %v480
    %v550 = vunpack.c.l.b16 %v481
    %v551 = vunpack.c.l.b16 %v482
    %v552 = vunpack.c.l.b16 %v483
    %v553 = vunpack.c.l.b16 %v484
    %v554 = vunpack.c.l.b16 %v485
    %v555 = vunpack.c.l.b16 %v486
    %v556 = vunpack.c.l.b16 %v487
    %v557 = vunpack.c.l.b16 %v488
    %v558 = vunpack.c.l.b16 %v489
    %v559 = vunpack.c.l.b16 %v490
    %v560 = vunpack.c.l.b16 %v491
    %v561 = vunpack.c.l.b16 %v492
    %v562 = vunpack.c.l.b16 %v493
    %v563 = vunpack.c.l.b16 %v494
    %v564 = vunpack.c.l.b16 %v495
    %v565 = vunpack.c.l.b16 %v496
    %v566 = vunpack.c.l.b16 %v497
    %v567 = vunpack.c.l.b16 %v498
    %v568 = vunpack.c.l.b16 %v499
    %v569 = vpack.c.b16 %v538, %v537
    %v570 = vpack.c.b16 %v540, %v539
    %v571 = vpack.c.b16 %v542, %v541
    %v572 = vpack.c.b16 %v544, %v543
    %v573 = vpack.c.b16 %v546, %v545
    %v574 = vpack.c.b16 %v548, %v547
    %v575 = vpack.c.b16 %v550, %v549
    %v576 = vpack.c.b16 %v552, %v551
    %v577 = vpack.c.b16 %v554, %v553
    %v578 = vpack.c.b16 %v556, %v555
    %v579 = vpack.c.b16 %v558, %v557
    %v580 = vpack.c.b16 %v560, %v559
    %v581 = vpack.c.b16 %v562, %v561
    %v582 = vpack.c.b16 %v564, %v563
    %v583 = vpack.c.b16 %v566, %v565
    %v584 = vpack.c.b16 %v568, %v567
    %601 = vmatprep.subr.bf16.mxu0 0
    %602 = vmatpush1.bf16.msra.mxu0 %v569
    %603 = vmatprep.subr.bf16.mxu0 0
    %604 = vmatpush1.bf16.msra.mxu0 %v570
    %605 = vmatprep.subr.bf16.mxu0 0
    %606 = vmatpush1.bf16.msra.mxu0 %v571
    %607 = vmatprep.subr.bf16.mxu0 0
    %608 = vmatpush1.bf16.msra.mxu0 %v572
    %609 = vmatprep.subr.bf16.mxu0 0
    %610 = vmatpush1.bf16.msra.mxu0 %v573
    %611 = vmatprep.subr.bf16.mxu0 0
    %612 = vmatpush1.bf16.msra.mxu0 %v574
    %613 = vmatprep.subr.bf16.mxu0 0
    %614 = vmatpush1.bf16.msra.mxu0 %v575
    %615 = vmatprep.subr.bf16.mxu0 0
    %616 = vmatpush1.bf16.msra.mxu0 %v576
    %617 = vmatprep.subr.bf16.mxu0 0
    %618 = vmatpush1.bf16.msra.mxu0 %v577
    %619 = vmatprep.subr.bf16.mxu0 0
    %620 = vmatpush1.bf16.msra.mxu0 %v578
    %621 = vmatprep.subr.bf16.mxu0 0
    %622 = vmatpush1.bf16.msra.mxu0 %v579
    %623 = vmatprep.subr.bf16.mxu0 0
    %624 = vmatpush1.bf16.msra.mxu0 %v580
    %625 = vmatprep.subr.bf16.mxu0 0
    %626 = vmatpush1.bf16.msra.mxu0 %v581
    %627 = vmatprep.subr.bf16.mxu0 0
    %628 = vmatpush1.bf16.msra.mxu0 %v582
    %629 = vmatprep.subr.bf16.mxu0 0
    %630 = vmatpush1.bf16.msra.mxu0 %v583
    %631 = vmatprep.subr.bf16.mxu0 0
    %632 = vmatpush1.bf16.msra.mxu0 %v584
    %633 = vmatprep.mubr.bf16.mxu0 %v453
    %634 = vmatmul.mubr.bf16.gmra.mrb[0].mxu0 %v452
    %v635 = vpop.f32.mrb[0].mxu0
    %v636 = vadd.f32 %v504, %v635
    %v637 = vpop.f32.mrb[0].mxu0
    %v638 = vpop.f32.mrb[0].mxu0
    %v639 = vadd.f32 %v504, %v638
    %v640 = vpop.f32.mrb[0].mxu0
    %641 = vmatprep.mubr.bf16.mxu0 %v455
    %642 = vmatmul.mubr.bf16.gmra.mrb[0].mxu0 %v454
    %v643 = vpop.f32.mrb[0].mxu0
    %v644 = vadd.f32 %v504, %v643
    %v645 = vpop.f32.mrb[0].mxu0
    %v646 = vpop.f32.mrb[0].mxu0
    %v647 = vadd.f32 %v504, %v646
    %v648 = vpop.f32.mrb[0].mxu0
    %649 = vmatprep.mubr.bf16.mxu0 %v457
    %650 = vmatmul.mubr.bf16.gmra.mrb[0].mxu0 %v456
    %v651 = vpop.f32.mrb[0].mxu0
    %v652 = vadd.f32 %v504, %v651
    %v653 = vpop.f32.mrb[0].mxu0
    %v654 = vpop.f32.mrb[0].mxu0
    %v655 = vadd.f32 %v504, %v654
    %v656 = vpop.f32.mrb[0].mxu0
    %657 = vmatprep.mubr.bf16.mxu0 %v459
    %658 = vmatmul.mubr.bf16.gmra.mrb[0].mxu0 %v458
    %v659 = vpop.f32.mrb[0].mxu0
    %v660 = vadd.f32 %v504, %v659
    %v661 = vpop.f32.mrb[0].mxu0
    %v662 = vpop.f32.mrb[0].mxu0
    %v663 = vadd.f32 %v504, %v662
    %v664 = vpop.f32.mrb[0].mxu0
    %665 = vmatprep.mubr.bf16.mxu0 %v461
    %666 = vmatmul.mubr.bf16.gmra.mrb[0].mxu0 %v460
    %v667 = vpop.f32.mrb[0].mxu0
    %v668 = vadd.f32 %v504, %v667
    %v669 = vpop.f32.mrb[0].mxu0
    %v670 = vpop.f32.mrb[0].mxu0
    %v671 = vadd.f32 %v504, %v670
    %v672 = vpop.f32.mrb[0].mxu0
    %673 = vmatprep.mubr.bf16.mxu0 %v463
    %674 = vmatmul.mubr.bf16.gmra.mrb[0].mxu0 %v462
    %v675 = vpop.f32.mrb[0].mxu0
    %v676 = vadd.f32 %v504, %v675
    %v677 = vpop.f32.mrb[0].mxu0
    %v678 = vpop.f32.mrb[0].mxu0
    %v679 = vadd.f32 %v504, %v678
    %v680 = vpop.f32.mrb[0].mxu0
    %681 = vmatprep.mubr.bf16.mxu0 %v465
    %682 = vmatmul.mubr.bf16.gmra.mrb[0].mxu0 %v464
    %v683 = vpop.f32.mrb[0].mxu0
    %v684 = vadd.f32 %v504, %v683
    %v685 = vpop.f32.mrb[0].mxu0
    %v686 = vpop.f32.mrb[0].mxu0
    %v687 = vadd.f32 %v504, %v686
    %v688 = vpop.f32.mrb[0].mxu0
    %689 = vmatprep.mubr.bf16.mxu0 %v467
    %690 = vmatmul.mubr.bf16.gmra.mrb[0].mxu0 %v466
    %v691 = vpop.f32.mrb[0].mxu0
    %v692 = vadd.f32 %v504, %v691
    %v693 = vpop.f32.mrb[0].mxu0
    %v694 = vpop.f32.mrb[0].mxu0
    %v695 = vadd.f32 %v504, %v694
    %v696 = vpop.f32.mrb[0].mxu0
    %697 = vdwg.mxu0
    %v698 = vmax.f32 %v636, 0.0
    %v699 = vmax.f32 %v639, 0.0
    %v700 = vmax.f32 %v644, 0.0
    %v701 = vmax.f32 %v647, 0.0
    %v702 = vmax.f32 %v652, 0.0
    %v703 = vmax.f32 %v655, 0.0
    %v704 = vmax.f32 %v660, 0.0
    %v705 = vmax.f32 %v663, 0.0
    %v706 = vmax.f32 %v668, 0.0
    %v707 = vmax.f32 %v671, 0.0
    %v708 = vmax.f32 %v676, 0.0
    %v709 = vmax.f32 %v679, 0.0
    %v710 = vmax.f32 %v684, 0.0
    %v711 = vmax.f32 %v687, 0.0
    %v712 = vmax.f32 %v692, 0.0
    %v713 = vmax.f32 %v695, 0.0
    %v714 = vpack.c.bf16 %v699, %v698
    %v715 = vpack.c.bf16 %v701, %v700
    %v716 = vpack.c.bf16 %v703, %v702
    %v717 = vpack.c.bf16 %v705, %v704
    %v718 = vpack.c.bf16 %v707, %v706
    %v719 = vpack.c.bf16 %v709, %v708
    %v720 = vpack.c.bf16 %v711, %v710
    %v721 = vpack.c.bf16 %v713, %v712
    %722 = vst [vmem:[#allocation2] sm:$0xff] %v714
    %723 = vst [vmem:[#allocation2 + $0x10] sm:$0xff] %v715
    %724 = vst [vmem:[#allocation2 + $0x20] sm:$0xff] %v716
    %725 = vst [vmem:[#allocation2 + $0x30] sm:$0xff] %v717
    %726 = vst [vmem:[#allocation2 + $0x40] sm:$0xff] %v718
    %727 = vst [vmem:[#allocation2 + $0x50] sm:$0xff] %v719
    %728 = vst [vmem:[#allocation2 + $0x60] sm:$0xff] %v720
    %729 = vst [vmem:[#allocation2 + $0x70] sm:$0xff] %v721
    %v730 = vld [vmem:[#allocation2] sm:$0xff]
    %v731 = vld [vmem:[#allocation2 + $0x10] sm:$0xff]
    %v732 = vld [vmem:[#allocation2 + $0x20] sm:$0xff]
    %v733 = vld [vmem:[#allocation2 + $0x30] sm:$0xff]
    %v734 = vld [vmem:[#allocation2 + $0x40] sm:$0xff]
    %v735 = vld [vmem:[#allocation2 + $0x50] sm:$0xff]
    %v736 = vld [vmem:[#allocation2 + $0x60] sm:$0xff]
    %v737 = vld [vmem:[#allocation2 + $0x70] sm:$0xff]
    %738 = vmatprep.subr.bf16.mxu0 0
    %739 = vmatpush1.bf16.msra.mxu0 %v730
    %740 = vmatprep.subr.bf16.mxu0 0
    %741 = vmatpush1.bf16.msra.mxu0 %v731
    %742 = vmatprep.subr.bf16.mxu0 0
    %743 = vmatpush1.bf16.msra.mxu0 %v732
    %744 = vmatprep.subr.bf16.mxu0 0
    %745 = vmatpush1.bf16.msra.mxu0 %v733
    %746 = vmatprep.subr.bf16.mxu0 0
    %747 = vmatpush1.bf16.msra.mxu0 %v734
    %748 = vmatprep.subr.bf16.mxu0 0
    %749 = vmatpush1.bf16.msra.mxu0 %v735
    %750 = vmatprep.subr.bf16.mxu0 0
    %751 = vmatpush1.bf16.msra.mxu0 %v736
    %752 = vmatprep.subr.bf16.mxu0 0
    %753 = vmatpush1.bf16.msra.mxu0 %v737
    %754 = vmatprep.subr.bf16.mxu0 0
    %755 = vmatpush1.bf16.msra.mxu0 0
    %756 = vmatprep.subr.bf16.mxu0 0
    %757 = vmatpush1.bf16.msra.mxu0 0
    %758 = vmatprep.subr.bf16.mxu0 0
    %759 = vmatpush1.bf16.msra.mxu0 0
    %760 = vmatprep.subr.bf16.mxu0 0
    %761 = vmatpush1.bf16.msra.mxu0 0
    %762 = vmatprep.subr.bf16.mxu0 0
    %763 = vmatpush1.bf16.msra.mxu0 0
    %764 = vmatprep.subr.bf16.mxu0 0
    %765 = vmatpush1.bf16.msra.mxu0 0
    %766 = vmatprep.subr.bf16.mxu0 0
    %767 = vmatpush1.bf16.msra.mxu0 0
    %768 = vmatprep.subr.bf16.mxu0 0
    %769 = vmatpush1.bf16.msra.mxu0 0
    %770 = vmatprep.mubr.bf16.mxu0 0
    %771 = vmatmul.mubr.bf16.gmra.mrb[0].mxu0 %v227
    %v772 = vpop.f32.mrb[0].mxu0
    %v773 = vadd.f32 0.0, %v772
    %v774 = vpop.f32.mrb[0].mxu0
    %v775 = vpop.f32.mrb[0].mxu0
    %v776 = vadd.f32 0.0, %v775
    %v777 = vpop.f32.mrb[0].mxu0
    %778 = vmatprep.mubr.bf16.mxu0 0
    %779 = vmatmul.mubr.bf16.gmra.mrb[0].mxu0 %v228
    %v780 = vpop.f32.mrb[0].mxu0
    %v781 = vadd.f32 0.0, %v780
    %v782 = vpop.f32.mrb[0].mxu0
    %v783 = vpop.f32.mrb[0].mxu0
    %v784 = vadd.f32 0.0, %v783
    %v785 = vpop.f32.mrb[0].mxu0
    %786 = vmatprep.mubr.bf16.mxu0 0
    %787 = vmatmul.mubr.bf16.gmra.mrb[0].mxu0 %v229
    %v788 = vpop.f32.mrb[0].mxu0
    %v789 = vadd.f32 0.0, %v788
    %v790 = vpop.f32.mrb[0].mxu0
    %v791 = vpop.f32.mrb[0].mxu0
    %v792 = vadd.f32 0.0, %v791
    %v793 = vpop.f32.mrb[0].mxu0
    %794 = vmatprep.mubr.bf16.mxu0 0
    %795 = vmatmul.mubr.bf16.gmra.mrb[0].mxu0 %v230
    %v796 = vpop.f32.mrb[0].mxu0
    %v797 = vadd.f32 0.0, %v796
    %v798 = vpop.f32.mrb[0].mxu0
    %v799 = vpop.f32.mrb[0].mxu0
    %v800 = vadd.f32 0.0, %v799
    %v801 = vpop.f32.mrb[0].mxu0
    %802 = vmatprep.mubr.bf16.mxu0 0
    %803 = vmatmul.mubr.bf16.gmra.mrb[0].mxu0 %v231
    %v804 = vpop.f32.mrb[0].mxu0
    %v805 = vadd.f32 0.0, %v804
    %v806 = vpop.f32.mrb[0].mxu0
    %v807 = vpop.f32.mrb[0].mxu0
    %v808 = vadd.f32 0.0, %v807
    %v809 = vpop.f32.mrb[0].mxu0
    %810 = vmatprep.mubr.bf16.mxu0 0
    %811 = vmatmul.mubr.bf16.gmra.mrb[0].mxu0 %v232
    %v812 = vpop.f32.mrb[0].mxu0
    %v813 = vadd.f32 0.0, %v812
    %v814 = vpop.f32.mrb[0].mxu0
    %v815 = vpop.f32.mrb[0].mxu0
    %v816 = vadd.f32 0.0, %v815
    %v817 = vpop.f32.mrb[0].mxu0
    %818 = vmatprep.mubr.bf16.mxu0 0
    %819 = vmatmul.mubr.bf16.gmra.mrb[0].mxu0 %v233
    %v820 = vpop.f32.mrb[0].mxu0
    %v821 = vadd.f32 0.0, %v820
    %v822 = vpop.f32.mrb[0].mxu0
    %v823 = vpop.f32.mrb[0].mxu0
    %v824 = vadd.f32 0.0, %v823
    %v825 = vpop.f32.mrb[0].mxu0
    %826 = vmatprep.mubr.bf16.mxu0 0
    %827 = vmatmul.mubr.bf16.gmra.mrb[0].mxu0 %v234
    %v828 = vpop.f32.mrb[0].mxu0
    %v829 = vadd.f32 0.0, %v828
    %v830 = vpop.f32.mrb[0].mxu0
    %v831 = vpop.f32.mrb[0].mxu0
    %v832 = vadd.f32 0.0, %v831
    %v833 = vpop.f32.mrb[0].mxu0
    %834 = vdwg.mxu0
    %v835 = vmul.f32 %v773, %v343
    %v836 = vmul.f32 %v776, %v348
    %v837 = vmul.f32 %v781, %v353
    %v838 = vmul.f32 %v784, %v358
    %v839 = vmul.f32 %v789, %v363
    %v840 = vmul.f32 %v792, %v368
    %v841 = vmul.f32 %v797, %v373
    %v842 = vmul.f32 %v800, %v378
    %v843 = vmul.f32 %v805, %v383
    %v844 = vmul.f32 %v808, %v388
    %v845 = vmul.f32 %v813, %v393
    %v846 = vmul.f32 %v816, %v398
    %v847 = vmul.f32 %v821, %v403
    %v848 = vmul.f32 %v824, %v408
    %v849 = vmul.f32 %v829, %v413
    %v850 = vmul.f32 %v832, %v418
    %v851 = vpack.c.bf16 %v836, %v835
    %v852 = vpack.c.bf16 %v838, %v837
    %v853 = vpack.c.bf16 %v840, %v839
    %v854 = vpack.c.bf16 %v842, %v841
    %v855 = vpack.c.bf16 %v844, %v843
    %v856 = vpack.c.bf16 %v846, %v845
    %v857 = vpack.c.bf16 %v848, %v847
    %v858 = vpack.c.bf16 %v850, %v849
    %859 = vst [vmem:[#allocation2 + $0x8] sm:$0xff] %v851
    %860 = vst [vmem:[#allocation2 + $0x18] sm:$0xff] %v852
    %861 = vst [vmem:[#allocation2 + $0x28] sm:$0xff] %v853
    %862 = vst [vmem:[#allocation2 + $0x38] sm:$0xff] %v854
    %863 = vst [vmem:[#allocation2 + $0x48] sm:$0xff] %v855
    %864 = vst [vmem:[#allocation2 + $0x58] sm:$0xff] %v856
    %865 = vst [vmem:[#allocation2 + $0x68] sm:$0xff] %v857
    %866 = vst [vmem:[#allocation2 + $0x78] sm:$0xff] %v858
    %v867 = vld [vmem:[#allocation2] sm:$0xff]
    %v868 = vld [vmem:[#allocation2 + $0x8] sm:$0xff]
    %v869 = vld [vmem:[#allocation2 + $0x10] sm:$0xff]
    %v870 = vld [vmem:[#allocation2 + $0x18] sm:$0xff]
    %v871 = vld [vmem:[#allocation2 + $0x20] sm:$0xff]
    %v872 = vld [vmem:[#allocation2 + $0x28] sm:$0xff]
    %v873 = vld [vmem:[#allocation2 + $0x30] sm:$0xff]
    %v874 = vld [vmem:[#allocation2 + $0x38] sm:$0xff]
    %v875 = vld [vmem:[#allocation2 + $0x40] sm:$0xff]
    %v876 = vld [vmem:[#allocation2 + $0x48] sm:$0xff]
    %v877 = vld [vmem:[#allocation2 + $0x50] sm:$0xff]
    %v878 = vld [vmem:[#allocation2 + $0x58] sm:$0xff]
    %v879 = vld [vmem:[#allocation2 + $0x60] sm:$0xff]
    %v880 = vld [vmem:[#allocation2 + $0x68] sm:$0xff]
    %v881 = vld [vmem:[#allocation2 + $0x70] sm:$0xff]
    %v882 = vld [vmem:[#allocation2 + $0x78] sm:$0xff]
    %v883 = vld [vmem:[#allocation8] sm:$0xf]
    %v884 = vld [vmem:[#allocation8 + $0x4] sm:$0xf]
    %v885 = vld [vmem:[#allocation8 + $0x8] sm:$0xf]
    %v886 = vld [vmem:[#allocation8 + $0xc] sm:$0xf]
    %v887 = vld [vmem:[#allocation8 + $0x10] sm:$0xf]
    %v888 = vld [vmem:[#allocation8 + $0x14] sm:$0xf]
    %v889 = vld [vmem:[#allocation8 + $0x18] sm:$0xf]
    %v890 = vld [vmem:[#allocation8 + $0x1c] sm:$0xf]
    %v891 = vld [vmem:[#allocation8 + $0x20] sm:$0xf]
    %v892 = vld [vmem:[#allocation8 + $0x24] sm:$0xf]
    %v893 = vld [vmem:[#allocation8 + $0x28] sm:$0xf]
    %v894 = vld [vmem:[#allocation8 + $0x2c] sm:$0xf]
    %v895 = vld [vmem:[#allocation8 + $0x30] sm:$0xf]
    %v896 = vld [vmem:[#allocation8 + $0x34] sm:$0xf]
    %v897 = vld [vmem:[#allocation8 + $0x38] sm:$0xf]
    %v898 = vld [vmem:[#allocation8 + $0x3c] sm:$0xf]
    %v899 = vld [vmem:[#allocation8 + $0x40] sm:$0xf]
    %v900 = vld [vmem:[#allocation8 + $0x44] sm:$0xf]
    %v901 = vld [vmem:[#allocation8 + $0x48] sm:$0xf]
    %v902 = vld [vmem:[#allocation8 + $0x4c] sm:$0xf]
    %v903 = vld [vmem:[#allocation8 + $0x50] sm:$0xf]
    %v904 = vld [vmem:[#allocation8 + $0x54] sm:$0xf]
    %v905 = vld [vmem:[#allocation8 + $0x58] sm:$0xf]
    %v906 = vld [vmem:[#allocation8 + $0x5c] sm:$0xf]
    %v907 = vld [vmem:[#allocation8 + $0x60] sm:$0xf]
    %v908 = vld [vmem:[#allocation8 + $0x64] sm:$0xf]
    %v909 = vld [vmem:[#allocation8 + $0x68] sm:$0xf]
    %v910 = vld [vmem:[#allocation8 + $0x6c] sm:$0xf]
    %v911 = vld [vmem:[#allocation8 + $0x70] sm:$0xf]
    %v912 = vld [vmem:[#allocation8 + $0x74] sm:$0xf]
    %v913 = vld [vmem:[#allocation8 + $0x78] sm:$0xf]
    %v914 = vld [vmem:[#allocation8 + $0x7c] sm:$0xf]
    %v915 = vld [vmem:[%s6 + $0x1] sm:$0x1]
    %v916 = vlaneseq
    %v917 = vshrl.u32 %v916, 7
    %v918 = vsub.s32 0, %v917
    %v919 = vrot.slane %v915, %v918
    %v952 = vunpack.c.l.b16 %v883
    %v953 = vunpack.c.l.b16 %v884
    %v954 = vunpack.c.l.b16 %v885
    %v955 = vunpack.c.l.b16 %v886
    %v956 = vunpack.c.l.b16 %v887
    %v957 = vunpack.c.l.b16 %v888
    %v958 = vunpack.c.l.b16 %v889
    %v959 = vunpack.c.l.b16 %v890
    %v960 = vunpack.c.l.b16 %v891
    %v961 = vunpack.c.l.b16 %v892
    %v962 = vunpack.c.l.b16 %v893
    %v963 = vunpack.c.l.b16 %v894
    %v964 = vunpack.c.l.b16 %v895
    %v965 = vunpack.c.l.b16 %v896
    %v966 = vunpack.c.l.b16 %v897
    %v967 = vunpack.c.l.b16 %v898
    %v968 = vunpack.c.l.b16 %v899
    %v969 = vunpack.c.l.b16 %v900
    %v970 = vunpack.c.l.b16 %v901
    %v971 = vunpack.c.l.b16 %v902
    %v972 = vunpack.c.l.b16 %v903
    %v973 = vunpack.c.l.b16 %v904
    %v974 = vunpack.c.l.b16 %v905
    %v975 = vunpack.c.l.b16 %v906
    %v976 = vunpack.c.l.b16 %v907
    %v977 = vunpack.c.l.b16 %v908
    %v978 = vunpack.c.l.b16 %v909
    %v979 = vunpack.c.l.b16 %v910
    %v980 = vunpack.c.l.b16 %v911
    %v981 = vunpack.c.l.b16 %v912
    %v982 = vunpack.c.l.b16 %v913
    %v983 = vunpack.c.l.b16 %v914
    %v984 = vpack.c.b16 %v953, %v952
    %v985 = vpack.c.b16 %v955, %v954
    %v986 = vpack.c.b16 %v957, %v956
    %v987 = vpack.c.b16 %v959, %v958
    %v988 = vpack.c.b16 %v961, %v960
    %v989 = vpack.c.b16 %v963, %v962
    %v990 = vpack.c.b16 %v965, %v964
    %v991 = vpack.c.b16 %v967, %v966
    %v992 = vpack.c.b16 %v969, %v968
    %v993 = vpack.c.b16 %v971, %v970
    %v994 = vpack.c.b16 %v973, %v972
    %v995 = vpack.c.b16 %v975, %v974
    %v996 = vpack.c.b16 %v977, %v976
    %v997 = vpack.c.b16 %v979, %v978
    %v998 = vpack.c.b16 %v981, %v980
    %v999 = vpack.c.b16 %v983, %v982
    %1016 = vmatprep.subr.bf16.mxu0 0
    %1017 = vmatpush1.bf16.msra.mxu0 %v984
    %1018 = vmatprep.subr.bf16.mxu0 0
    %1019 = vmatpush1.bf16.msra.mxu0 %v985
    %1020 = vmatprep.subr.bf16.mxu0 0
    %1021 = vmatpush1.bf16.msra.mxu0 %v986
    %1022 = vmatprep.subr.bf16.mxu0 0
    %1023 = vmatpush1.bf16.msra.mxu0 %v987
    %1024 = vmatprep.subr.bf16.mxu0 0
    %1025 = vmatpush1.bf16.msra.mxu0 %v988
    %1026 = vmatprep.subr.bf16.mxu0 0
    %1027 = vmatpush1.bf16.msra.mxu0 %v989
    %1028 = vmatprep.subr.bf16.mxu0 0
    %1029 = vmatpush1.bf16.msra.mxu0 %v990
    %1030 = vmatprep.subr.bf16.mxu0 0
    %1031 = vmatpush1.bf16.msra.mxu0 %v991
    %1032 = vmatprep.subr.bf16.mxu0 0
    %1033 = vmatpush1.bf16.msra.mxu0 %v992
    %1034 = vmatprep.subr.bf16.mxu0 0
    %1035 = vmatpush1.bf16.msra.mxu0 %v993
    %1036 = vmatprep.subr.bf16.mxu0 0
    %1037 = vmatpush1.bf16.msra.mxu0 %v994
    %1038 = vmatprep.subr.bf16.mxu0 0
    %1039 = vmatpush1.bf16.msra.mxu0 %v995
    %1040 = vmatprep.subr.bf16.mxu0 0
    %1041 = vmatpush1.bf16.msra.mxu0 %v996
    %1042 = vmatprep.subr.bf16.mxu0 0
    %1043 = vmatpush1.bf16.msra.mxu0 %v997
    %1044 = vmatprep.subr.bf16.mxu0 0
    %1045 = vmatpush1.bf16.msra.mxu0 %v998
    %1046 = vmatprep.subr.bf16.mxu0 0
    %1047 = vmatpush1.bf16.msra.mxu0 %v999
    %1048 = vmatprep.mubr.bf16.mxu0 %v868
    %1049 = vmatmul.mubr.bf16.gmra.mrb[0].mxu0 %v867
    %v1050 = vpop.f32.mrb[0].mxu0
    %v1051 = vadd.f32 %v919, %v1050
    %v1052 = vpop.f32.mrb[0].mxu0
    %v1053 = vpop.f32.mrb[0].mxu0
    %v1054 = vadd.f32 %v919, %v1053
    %v1055 = vpop.f32.mrb[0].mxu0
    %1056 = vmatprep.mubr.bf16.mxu0 %v870
    %1057 = vmatmul.mubr.bf16.gmra.mrb[0].mxu0 %v869
    %v1058 = vpop.f32.mrb[0].mxu0
    %v1059 = vadd.f32 %v919, %v1058
    %v1060 = vpop.f32.mrb[0].mxu0
    %v1061 = vpop.f32.mrb[0].mxu0
    %v1062 = vadd.f32 %v919, %v1061
    %v1063 = vpop.f32.mrb[0].mxu0
    %1064 = vmatprep.mubr.bf16.mxu0 %v872
    %1065 = vmatmul.mubr.bf16.gmra.mrb[0].mxu0 %v871
    %v1066 = vpop.f32.mrb[0].mxu0
    %v1067 = vadd.f32 %v919, %v1066
    %v1068 = vpop.f32.mrb[0].mxu0
    %v1069 = vpop.f32.mrb[0].mxu0
    %v1070 = vadd.f32 %v919, %v1069
    %v1071 = vpop.f32.mrb[0].mxu0
    %1072 = vmatprep.mubr.bf16.mxu0 %v874
    %1073 = vmatmul.mubr.bf16.gmra.mrb[0].mxu0 %v873
    %v1074 = vpop.f32.mrb[0].mxu0
    %v1075 = vadd.f32 %v919, %v1074
    %v1076 = vpop.f32.mrb[0].mxu0
    %v1077 = vpop.f32.mrb[0].mxu0
    %v1078 = vadd.f32 %v919, %v1077
    %v1079 = vpop.f32.mrb[0].mxu0
    %1080 = vmatprep.mubr.bf16.mxu0 %v876
    %1081 = vmatmul.mubr.bf16.gmra.mrb[0].mxu0 %v875
    %v1082 = vpop.f32.mrb[0].mxu0
    %v1083 = vadd.f32 %v919, %v1082
    %v1084 = vpop.f32.mrb[0].mxu0
    %v1085 = vpop.f32.mrb[0].mxu0
    %v1086 = vadd.f32 %v919, %v1085
    %v1087 = vpop.f32.mrb[0].mxu0
    %1088 = vmatprep.mubr.bf16.mxu0 %v878
    %1089 = vmatmul.mubr.bf16.gmra.mrb[0].mxu0 %v877
    %v1090 = vpop.f32.mrb[0].mxu0
    %v1091 = vadd.f32 %v919, %v1090
    %v1092 = vpop.f32.mrb[0].mxu0
    %v1093 = vpop.f32.mrb[0].mxu0
    %v1094 = vadd.f32 %v919, %v1093
    %v1095 = vpop.f32.mrb[0].mxu0
    %1096 = vmatprep.mubr.bf16.mxu0 %v880
    %1097 = vmatmul.mubr.bf16.gmra.mrb[0].mxu0 %v879
    %v1098 = vpop.f32.mrb[0].mxu0
    %v1099 = vadd.f32 %v919, %v1098
    %v1100 = vpop.f32.mrb[0].mxu0
    %v1101 = vpop.f32.mrb[0].mxu0
    %v1102 = vadd.f32 %v919, %v1101
    %v1103 = vpop.f32.mrb[0].mxu0
    %1104 = vmatprep.mubr.bf16.mxu0 %v882
    %1105 = vmatmul.mubr.bf16.gmra.mrb[0].mxu0 %v881
    %v1106 = vpop.f32.mrb[0].mxu0
    %v1107 = vadd.f32 %v919, %v1106
    %v1108 = vpop.f32.mrb[0].mxu0
    %v1109 = vpop.f32.mrb[0].mxu0
    %v1110 = vadd.f32 %v919, %v1109
    %v1111 = vpop.f32.mrb[0].mxu0
    %1112 = vdwg.mxu0
    %v1113 = vmax.f32 %v1051, 0.0
    %v1114 = vmax.f32 %v1054, 0.0
    %v1115 = vmax.f32 %v1059, 0.0
    %v1116 = vmax.f32 %v1062, 0.0
    %v1117 = vmax.f32 %v1067, 0.0
    %v1118 = vmax.f32 %v1070, 0.0
    %v1119 = vmax.f32 %v1075, 0.0
    %v1120 = vmax.f32 %v1078, 0.0
    %v1121 = vmax.f32 %v1083, 0.0
    %v1122 = vmax.f32 %v1086, 0.0
    %v1123 = vmax.f32 %v1091, 0.0
    %v1124 = vmax.f32 %v1094, 0.0
    %v1125 = vmax.f32 %v1099, 0.0
    %v1126 = vmax.f32 %v1102, 0.0
    %v1127 = vmax.f32 %v1107, 0.0
    %v1128 = vmax.f32 %v1110, 0.0
    %v1129 = vpack.c.bf16 %v1114, %v1113
    %v1130 = vpack.c.bf16 %v1116, %v1115
    %v1131 = vpack.c.bf16 %v1118, %v1117
    %v1132 = vpack.c.bf16 %v1120, %v1119
    %v1133 = vpack.c.bf16 %v1122, %v1121
    %v1134 = vpack.c.bf16 %v1124, %v1123
    %v1135 = vpack.c.bf16 %v1126, %v1125
    %v1136 = vpack.c.bf16 %v1128, %v1127
    %1137 = vst [vmem:[#allocation2] sm:$0xff] %v1129
    %1138 = vst [vmem:[#allocation2 + $0x10] sm:$0xff] %v1130
    %1139 = vst [vmem:[#allocation2 + $0x20] sm:$0xff] %v1131
    %1140 = vst [vmem:[#allocation2 + $0x30] sm:$0xff] %v1132
    %1141 = vst [vmem:[#allocation2 + $0x40] sm:$0xff] %v1133
    %1142 = vst [vmem:[#allocation2 + $0x50] sm:$0xff] %v1134
    %1143 = vst [vmem:[#allocation2 + $0x60] sm:$0xff] %v1135
    %1144 = vst [vmem:[#allocation2 + $0x70] sm:$0xff] %v1136
    %v1145 = vld [vmem:[#allocation2] sm:$0xff]
    %v1146 = vld [vmem:[#allocation2 + $0x10] sm:$0xff]
    %v1147 = vld [vmem:[#allocation2 + $0x20] sm:$0xff]
    %v1148 = vld [vmem:[#allocation2 + $0x30] sm:$0xff]
    %v1149 = vld [vmem:[#allocation2 + $0x40] sm:$0xff]
    %v1150 = vld [vmem:[#allocation2 + $0x50] sm:$0xff]
    %v1151 = vld [vmem:[#allocation2 + $0x60] sm:$0xff]
    %v1152 = vld [vmem:[#allocation2 + $0x70] sm:$0xff]
    %1153 = vmatprep.subr.bf16.mxu0 0
    %1154 = vmatpush1.bf16.msra.mxu0 %v1145
    %1155 = vmatprep.subr.bf16.mxu0 0
    %1156 = vmatpush1.bf16.msra.mxu0 %v1146
    %1157 = vmatprep.subr.bf16.mxu0 0
    %1158 = vmatpush1.bf16.msra.mxu0 %v1147
    %1159 = vmatprep.subr.bf16.mxu0 0
    %1160 = vmatpush1.bf16.msra.mxu0 %v1148
    %1161 = vmatprep.subr.bf16.mxu0 0
    %1162 = vmatpush1.bf16.msra.mxu0 %v1149
    %1163 = vmatprep.subr.bf16.mxu0 0
    %1164 = vmatpush1.bf16.msra.mxu0 %v1150
    %1165 = vmatprep.subr.bf16.mxu0 0
    %1166 = vmatpush1.bf16.msra.mxu0 %v1151
    %1167 = vmatprep.subr.bf16.mxu0 0
    %1168 = vmatpush1.bf16.msra.mxu0 %v1152
    %1169 = vmatprep.subr.bf16.mxu0 0
    %1170 = vmatpush1.bf16.msra.mxu0 0
    %1171 = vmatprep.subr.bf16.mxu0 0
    %1172 = vmatpush1.bf16.msra.mxu0 0
    %1173 = vmatprep.subr.bf16.mxu0 0
    %1174 = vmatpush1.bf16.msra.mxu0 0
    %1175 = vmatprep.subr.bf16.mxu0 0
    %1176 = vmatpush1.bf16.msra.mxu0 0
    %1177 = vmatprep.subr.bf16.mxu0 0
    %1178 = vmatpush1.bf16.msra.mxu0 0
    %1179 = vmatprep.subr.bf16.mxu0 0
    %1180 = vmatpush1.bf16.msra.mxu0 0
    %1181 = vmatprep.subr.bf16.mxu0 0
    %1182 = vmatpush1.bf16.msra.mxu0 0
    %1183 = vmatprep.subr.bf16.mxu0 0
    %1184 = vmatpush1.bf16.msra.mxu0 0
    %1185 = vmatprep.mubr.bf16.mxu0 0
    %1186 = vmatmul.mubr.bf16.gmra.mrb[0].mxu0 %v227
    %v1187 = vpop.f32.mrb[0].mxu0
    %v1188 = vadd.f32 0.0, %v1187
    %v1189 = vpop.f32.mrb[0].mxu0
    %v1190 = vpop.f32.mrb[0].mxu0
    %v1191 = vadd.f32 0.0, %v1190
    %v1192 = vpop.f32.mrb[0].mxu0
    %1193 = vmatprep.mubr.bf16.mxu0 0
    %1194 = vmatmul.mubr.bf16.gmra.mrb[0].mxu0 %v228
    %v1195 = vpop.f32.mrb[0].mxu0
    %v1196 = vadd.f32 0.0, %v1195
    %v1197 = vpop.f32.mrb[0].mxu0
    %v1198 = vpop.f32.mrb[0].mxu0
    %v1199 = vadd.f32 0.0, %v1198
    %v1200 = vpop.f32.mrb[0].mxu0
    %1201 = vmatprep.mubr.bf16.mxu0 0
    %1202 = vmatmul.mubr.bf16.gmra.mrb[0].mxu0 %v229
    %v1203 = vpop.f32.mrb[0].mxu0
    %v1204 = vadd.f32 0.0, %v1203
    %v1205 = vpop.f32.mrb[0].mxu0
    %v1206 = vpop.f32.mrb[0].mxu0
    %v1207 = vadd.f32 0.0, %v1206
    %v1208 = vpop.f32.mrb[0].mxu0
    %1209 = vmatprep.mubr.bf16.mxu0 0
    %1210 = vmatmul.mubr.bf16.gmra.mrb[0].mxu0 %v230
    %v1211 = vpop.f32.mrb[0].mxu0
    %v1212 = vadd.f32 0.0, %v1211
    %v1213 = vpop.f32.mrb[0].mxu0
    %v1214 = vpop.f32.mrb[0].mxu0
    %v1215 = vadd.f32 0.0, %v1214
    %v1216 = vpop.f32.mrb[0].mxu0
    %1217 = vmatprep.mubr.bf16.mxu0 0
    %1218 = vmatmul.mubr.bf16.gmra.mrb[0].mxu0 %v231
    %v1219 = vpop.f32.mrb[0].mxu0
    %v1220 = vadd.f32 0.0, %v1219
    %v1221 = vpop.f32.mrb[0].mxu0
    %v1222 = vpop.f32.mrb[0].mxu0
    %v1223 = vadd.f32 0.0, %v1222
    %v1224 = vpop.f32.mrb[0].mxu0
    %1225 = vmatprep.mubr.bf16.mxu0 0
    %1226 = vmatmul.mubr.bf16.gmra.mrb[0].mxu0 %v232
    %v1227 = vpop.f32.mrb[0].mxu0
    %v1228 = vadd.f32 0.0, %v1227
    %v1229 = vpop.f32.mrb[0].mxu0
    %v1230 = vpop.f32.mrb[0].mxu0
    %v1231 = vadd.f32 0.0, %v1230
    %v1232 = vpop.f32.mrb[0].mxu0
    %1233 = vmatprep.mubr.bf16.mxu0 0
    %1234 = vmatmul.mubr.bf16.gmra.mrb[0].mxu0 %v233
    %v1235 = vpop.f32.mrb[0].mxu0
    %v1236 = vadd.f32 0.0, %v1235
    %v1237 = vpop.f32.mrb[0].mxu0
    %v1238 = vpop.f32.mrb[0].mxu0
    %v1239 = vadd.f32 0.0, %v1238
    %v1240 = vpop.f32.mrb[0].mxu0
    %1241 = vmatprep.mubr.bf16.mxu0 0
    %1242 = vmatmul.mubr.bf16.gmra.mrb[0].mxu0 %v234
    %v1243 = vpop.f32.mrb[0].mxu0
    %v1244 = vadd.f32 0.0, %v1243
    %v1245 = vpop.f32.mrb[0].mxu0
    %v1246 = vpop.f32.mrb[0].mxu0
    %v1247 = vadd.f32 0.0, %v1246
    %v1248 = vpop.f32.mrb[0].mxu0
    %1249 = vdwg.mxu0
    %v1250 = vmul.f32 %v1188, %v343
    %v1251 = vmul.f32 %v1191, %v348
    %v1252 = vmul.f32 %v1196, %v353
    %v1253 = vmul.f32 %v1199, %v358
    %v1254 = vmul.f32 %v1204, %v363
    %v1255 = vmul.f32 %v1207, %v368
    %v1256 = vmul.f32 %v1212, %v373
    %v1257 = vmul.f32 %v1215, %v378
    %v1258 = vmul.f32 %v1220, %v383
    %v1259 = vmul.f32 %v1223, %v388
    %v1260 = vmul.f32 %v1228, %v393
    %v1261 = vmul.f32 %v1231, %v398
    %v1262 = vmul.f32 %v1236, %v403
    %v1263 = vmul.f32 %v1239, %v408
    %v1264 = vmul.f32 %v1244, %v413
    %v1265 = vmul.f32 %v1247, %v418
    %v1266 = vpack.c.bf16 %v1251, %v1250
    %v1267 = vpack.c.bf16 %v1253, %v1252
    %v1268 = vpack.c.bf16 %v1255, %v1254
    %v1269 = vpack.c.bf16 %v1257, %v1256
    %v1270 = vpack.c.bf16 %v1259, %v1258
    %v1271 = vpack.c.bf16 %v1261, %v1260
    %v1272 = vpack.c.bf16 %v1263, %v1262
    %v1273 = vpack.c.bf16 %v1265, %v1264
    %1274 = vst [vmem:[#allocation2 + $0x8] sm:$0xff] %v1266
    %1275 = vst [vmem:[#allocation2 + $0x18] sm:$0xff] %v1267
    %1276 = vst [vmem:[#allocation2 + $0x28] sm:$0xff] %v1268
    %1277 = vst [vmem:[#allocation2 + $0x38] sm:$0xff] %v1269
    %1278 = vst [vmem:[#allocation2 + $0x48] sm:$0xff] %v1270
    %1279 = vst [vmem:[#allocation2 + $0x58] sm:$0xff] %v1271
    %1280 = vst [vmem:[#allocation2 + $0x68] sm:$0xff] %v1272
    %1281 = vst [vmem:[#allocation2 + $0x78] sm:$0xff] %v1273
    %v1282 = vld [vmem:[#allocation2] sm:$0xff]
    %v1283 = vld [vmem:[#allocation2 + $0x8] sm:$0xff]
    %v1284 = vld [vmem:[#allocation2 + $0x10] sm:$0xff]
    %v1285 = vld [vmem:[#allocation2 + $0x18] sm:$0xff]
    %v1286 = vld [vmem:[#allocation2 + $0x20] sm:$0xff]
    %v1287 = vld [vmem:[#allocation2 + $0x28] sm:$0xff]
    %v1288 = vld [vmem:[#allocation2 + $0x30] sm:$0xff]
    %v1289 = vld [vmem:[#allocation2 + $0x38] sm:$0xff]
    %v1290 = vld [vmem:[#allocation2 + $0x40] sm:$0xff]
    %v1291 = vld [vmem:[#allocation2 + $0x48] sm:$0xff]
    %v1292 = vld [vmem:[#allocation2 + $0x50] sm:$0xff]
    %v1293 = vld [vmem:[#allocation2 + $0x58] sm:$0xff]
    %v1294 = vld [vmem:[#allocation2 + $0x60] sm:$0xff]
    %v1295 = vld [vmem:[#allocation2 + $0x68] sm:$0xff]
    %v1296 = vld [vmem:[#allocation2 + $0x70] sm:$0xff]
    %v1297 = vld [vmem:[#allocation2 + $0x78] sm:$0xff]
    %v1298 = vld [vmem:[#allocation9] sm:$0xf]
    %v1299 = vld [vmem:[#allocation9 + $0x4] sm:$0xf]
    %v1300 = vld [vmem:[#allocation9 + $0x8] sm:$0xf]
    %v1301 = vld [vmem:[#allocation9 + $0xc] sm:$0xf]
    %v1302 = vld [vmem:[#allocation9 + $0x10] sm:$0xf]
    %v1303 = vld [vmem:[#allocation9 + $0x14] sm:$0xf]
    %v1304 = vld [vmem:[#allocation9 + $0x18] sm:$0xf]
    %v1305 = vld [vmem:[#allocation9 + $0x1c] sm:$0xf]
    %v1306 = vld [vmem:[#allocation9 + $0x20] sm:$0xf]
    %v1307 = vld [vmem:[#allocation9 + $0x24] sm:$0xf]
    %v1308 = vld [vmem:[#allocation9 + $0x28] sm:$0xf]
    %v1309 = vld [vmem:[#allocation9 + $0x2c] sm:$0xf]
    %v1310 = vld [vmem:[#allocation9 + $0x30] sm:$0xf]
    %v1311 = vld [vmem:[#allocation9 + $0x34] sm:$0xf]
    %v1312 = vld [vmem:[#allocation9 + $0x38] sm:$0xf]
    %v1313 = vld [vmem:[#allocation9 + $0x3c] sm:$0xf]
    %v1314 = vld [vmem:[#allocation9 + $0x40] sm:$0xf]
    %v1315 = vld [vmem:[#allocation9 + $0x44] sm:$0xf]
    %v1316 = vld [vmem:[#allocation9 + $0x48] sm:$0xf]
    %v1317 = vld [vmem:[#allocation9 + $0x4c] sm:$0xf]
    %v1318 = vld [vmem:[#allocation9 + $0x50] sm:$0xf]
    %v1319 = vld [vmem:[#allocation9 + $0x54] sm:$0xf]
    %v1320 = vld [vmem:[#allocation9 + $0x58] sm:$0xf]
    %v1321 = vld [vmem:[#allocation9 + $0x5c] sm:$0xf]
    %v1322 = vld [vmem:[#allocation9 + $0x60] sm:$0xf]
    %v1323 = vld [vmem:[#allocation9 + $0x64] sm:$0xf]
    %v1324 = vld [vmem:[#allocation9 + $0x68] sm:$0xf]
    %v1325 = vld [vmem:[#allocation9 + $0x6c] sm:$0xf]
    %v1326 = vld [vmem:[#allocation9 + $0x70] sm:$0xf]
    %v1327 = vld [vmem:[#allocation9 + $0x74] sm:$0xf]
    %v1328 = vld [vmem:[#allocation9 + $0x78] sm:$0xf]
    %v1329 = vld [vmem:[#allocation9 + $0x7c] sm:$0xf]
    %v1330 = vld [vmem:[%s6 + $0x2] sm:$0x1]
    %v1331 = vlaneseq
    %v1332 = vshrl.u32 %v1331, 7
    %v1333 = vsub.s32 0, %v1332
    %v1334 = vrot.slane %v1330, %v1333
    %v1367 = vunpack.c.l.b16 %v1298
    %v1368 = vunpack.c.l.b16 %v1299
    %v1369 = vunpack.c.l.b16 %v1300
    %v1370 = vunpack.c.l.b16 %v1301
    %v1371 = vunpack.c.l.b16 %v1302
    %v1372 = vunpack.c.l.b16 %v1303
    %v1373 = vunpack.c.l.b16 %v1304
    %v1374 = vunpack.c.l.b16 %v1305
    %v1375 = vunpack.c.l.b16 %v1306
    %v1376 = vunpack.c.l.b16 %v1307
    %v1377 = vunpack.c.l.b16 %v1308
    %v1378 = vunpack.c.l.b16 %v1309
    %v1379 = vunpack.c.l.b16 %v1310
    %v1380 = vunpack.c.l.b16 %v1311
    %v1381 = vunpack.c.l.b16 %v1312
    %v1382 = vunpack.c.l.b16 %v1313
    %v1383 = vunpack.c.l.b16 %v1314
    %v1384 = vunpack.c.l.b16 %v1315
    %v1385 = vunpack.c.l.b16 %v1316
    %v1386 = vunpack.c.l.b16 %v1317
    %v1387 = vunpack.c.l.b16 %v1318
    %v1388 = vunpack.c.l.b16 %v1319
    %v1389 = vunpack.c.l.b16 %v1320
    %v1390 = vunpack.c.l.b16 %v1321
    %v1391 = vunpack.c.l.b16 %v1322
    %v1392 = vunpack.c.l.b16 %v1323
    %v1393 = vunpack.c.l.b16 %v1324
    %v1394 = vunpack.c.l.b16 %v1325
    %v1395 = vunpack.c.l.b16 %v1326
    %v1396 = vunpack.c.l.b16 %v1327
    %v1397 = vunpack.c.l.b16 %v1328
    %v1398 = vunpack.c.l.b16 %v1329
    %v1399 = vpack.c.b16 %v1368, %v1367
    %v1400 = vpack.c.b16 %v1370, %v1369
    %v1401 = vpack.c.b16 %v1372, %v1371
    %v1402 = vpack.c.b16 %v1374, %v1373
    %v1403 = vpack.c.b16 %v1376, %v1375
    %v1404 = vpack.c.b16 %v1378, %v1377
    %v1405 = vpack.c.b16 %v1380, %v1379
    %v1406 = vpack.c.b16 %v1382, %v1381
    %v1407 = vpack.c.b16 %v1384, %v1383
    %v1408 = vpack.c.b16 %v1386, %v1385
    %v1409 = vpack.c.b16 %v1388, %v1387
    %v1410 = vpack.c.b16 %v1390, %v1389
    %v1411 = vpack.c.b16 %v1392, %v1391
    %v1412 = vpack.c.b16 %v1394, %v1393
    %v1413 = vpack.c.b16 %v1396, %v1395
    %v1414 = vpack.c.b16 %v1398, %v1397
    %1431 = vmatprep.subr.bf16.mxu0 0
    %1432 = vmatpush1.bf16.msra.mxu0 %v1399
    %1433 = vmatprep.subr.bf16.mxu0 0
    %1434 = vmatpush1.bf16.msra.mxu0 %v1400
    %1435 = vmatprep.subr.bf16.mxu0 0
    %1436 = vmatpush1.bf16.msra.mxu0 %v1401
    %1437 = vmatprep.subr.bf16.mxu0 0
    %1438 = vmatpush1.bf16.msra.mxu0 %v1402
    %1439 = vmatprep.subr.bf16.mxu0 0
    %1440 = vmatpush1.bf16.msra.mxu0 %v1403
    %1441 = vmatprep.subr.bf16.mxu0 0
    %1442 = vmatpush1.bf16.msra.mxu0 %v1404
    %1443 = vmatprep.subr.bf16.mxu0 0
    %1444 = vmatpush1.bf16.msra.mxu0 %v1405
    %1445 = vmatprep.subr.bf16.mxu0 0
    %1446 = vmatpush1.bf16.msra.mxu0 %v1406
    %1447 = vmatprep.subr.bf16.mxu0 0
    %1448 = vmatpush1.bf16.msra.mxu0 %v1407
    %1449 = vmatprep.subr.bf16.mxu0 0
    %1450 = vmatpush1.bf16.msra.mxu0 %v1408
    %1451 = vmatprep.subr.bf16.mxu0 0
    %1452 = vmatpush1.bf16.msra.mxu0 %v1409
    %1453 = vmatprep.subr.bf16.mxu0 0
    %1454 = vmatpush1.bf16.msra.mxu0 %v1410
    %1455 = vmatprep.subr.bf16.mxu0 0
    %1456 = vmatpush1.bf16.msra.mxu0 %v1411
    %1457 = vmatprep.subr.bf16.mxu0 0
    %1458 = vmatpush1.bf16.msra.mxu0 %v1412
    %1459 = vmatprep.subr.bf16.mxu0 0
    %1460 = vmatpush1.bf16.msra.mxu0 %v1413
    %1461 = vmatprep.subr.bf16.mxu0 0
    %1462 = vmatpush1.bf16.msra.mxu0 %v1414
    %1463 = vmatprep.mubr.bf16.mxu0 %v1283
    %1464 = vmatmul.mubr.bf16.gmra.mrb[0].mxu0 %v1282
    %v1465 = vpop.f32.mrb[0].mxu0
    %v1466 = vadd.f32 %v1334, %v1465
    %v1467 = vpop.f32.mrb[0].mxu0
    %v1468 = vpop.f32.mrb[0].mxu0
    %v1469 = vadd.f32 %v1334, %v1468
    %v1470 = vpop.f32.mrb[0].mxu0
    %1471 = vmatprep.mubr.bf16.mxu0 %v1285
    %1472 = vmatmul.mubr.bf16.gmra.mrb[0].mxu0 %v1284
    %v1473 = vpop.f32.mrb[0].mxu0
    %v1474 = vadd.f32 %v1334, %v1473
    %v1475 = vpop.f32.mrb[0].mxu0
    %v1476 = vpop.f32.mrb[0].mxu0
    %v1477 = vadd.f32 %v1334, %v1476
    %v1478 = vpop.f32.mrb[0].mxu0
    %1479 = vmatprep.mubr.bf16.mxu0 %v1287
    %1480 = vmatmul.mubr.bf16.gmra.mrb[0].mxu0 %v1286
    %v1481 = vpop.f32.mrb[0].mxu0
    %v1482 = vadd.f32 %v1334, %v1481
    %v1483 = vpop.f32.mrb[0].mxu0
    %v1484 = vpop.f32.mrb[0].mxu0
    %v1485 = vadd.f32 %v1334, %v1484
    %v1486 = vpop.f32.mrb[0].mxu0
    %1487 = vmatprep.mubr.bf16.mxu0 %v1289
    %1488 = vmatmul.mubr.bf16.gmra.mrb[0].mxu0 %v1288
    %v1489 = vpop.f32.mrb[0].mxu0
    %v1490 = vadd.f32 %v1334, %v1489
    %v1491 = vpop.f32.mrb[0].mxu0
    %v1492 = vpop.f32.mrb[0].mxu0
    %v1493 = vadd.f32 %v1334, %v1492
    %v1494 = vpop.f32.mrb[0].mxu0
    %1495 = vmatprep.mubr.bf16.mxu0 %v1291
    %1496 = vmatmul.mubr.bf16.gmra.mrb[0].mxu0 %v1290
    %v1497 = vpop.f32.mrb[0].mxu0
    %v1498 = vadd.f32 %v1334, %v1497
    %v1499 = vpop.f32.mrb[0].mxu0
    %v1500 = vpop.f32.mrb[0].mxu0
    %v1501 = vadd.f32 %v1334, %v1500
    %v1502 = vpop.f32.mrb[0].mxu0
    %1503 = vmatprep.mubr.bf16.mxu0 %v1293
    %1504 = vmatmul.mubr.bf16.gmra.mrb[0].mxu0 %v1292
    %v1505 = vpop.f32.mrb[0].mxu0
    %v1506 = vadd.f32 %v1334, %v1505
    %v1507 = vpop.f32.mrb[0].mxu0
    %v1508 = vpop.f32.mrb[0].mxu0
    %v1509 = vadd.f32 %v1334, %v1508
    %v1510 = vpop.f32.mrb[0].mxu0
    %1511 = vmatprep.mubr.bf16.mxu0 %v1295
    %1512 = vmatmul.mubr.bf16.gmra.mrb[0].mxu0 %v1294
    %v1513 = vpop.f32.mrb[0].mxu0
    %v1514 = vadd.f32 %v1334, %v1513
    %v1515 = vpop.f32.mrb[0].mxu0
    %v1516 = vpop.f32.mrb[0].mxu0
    %v1517 = vadd.f32 %v1334, %v1516
    %v1518 = vpop.f32.mrb[0].mxu0
    %1519 = vmatprep.mubr.bf16.mxu0 %v1297
    %1520 = vmatmul.mubr.bf16.gmra.mrb[0].mxu0 %v1296
    %v1521 = vpop.f32.mrb[0].mxu0
    %v1522 = vadd.f32 %v1334, %v1521
    %v1523 = vpop.f32.mrb[0].mxu0
    %v1524 = vpop.f32.mrb[0].mxu0
    %v1525 = vadd.f32 %v1334, %v1524
    %v1526 = vpop.f32.mrb[0].mxu0
    %1527 = vdwg.mxu0
    %1528 = vst [vmem:[#allocation11] sm:$0xff] %v1466
    %1529 = vst [vmem:[#allocation11 + $0x8] sm:$0xff] %v1469
    %1530 = vst [vmem:[#allocation11 + $0x10] sm:$0xff] %v1474
    %1531 = vst [vmem:[#allocation11 + $0x18] sm:$0xff] %v1477
    %1532 = vst [vmem:[#allocation11 + $0x20] sm:$0xff] %v1482
    %1533 = vst [vmem:[#allocation11 + $0x28] sm:$0xff] %v1485
    %1534 = vst [vmem:[#allocation11 + $0x30] sm:$0xff] %v1490
    %1535 = vst [vmem:[#allocation11 + $0x38] sm:$0xff] %v1493
    %1536 = vst [vmem:[#allocation11 + $0x40] sm:$0xff] %v1498
    %1537 = vst [vmem:[#allocation11 + $0x48] sm:$0xff] %v1501
    %1538 = vst [vmem:[#allocation11 + $0x50] sm:$0xff] %v1506
    %1539 = vst [vmem:[#allocation11 + $0x58] sm:$0xff] %v1509
    %1540 = vst [vmem:[#allocation11 + $0x60] sm:$0xff] %v1514
    %1541 = vst [vmem:[#allocation11 + $0x68] sm:$0xff] %v1517
    %1542 = vst [vmem:[#allocation11 + $0x70] sm:$0xff] %v1522
    %1543 = vst [vmem:[#allocation11 + $0x78] sm:$0xff] %v1525
    // Predicated region
    $region46: #{tpu_custom_call.1} parent=1 // pred_check
      _
    $region47: #{tpu_custom_call.1} parent=1 // pred_check_branch
      %1545 = sbr.rel (0) target = $region49
    $region48: #{tpu_custom_call.1} parent=1 // pred_region
      %s1547 = ssub.s32 2048, 2048
      %1548 = vsyncadd [#allocation5], %s1547
      %s1549 = sshll.u32 [#allocation11], 4
      %s1550 = int_to_ptr.vmem [resolvable:$true] %s1549
      %1555 = dma.vmem_to_hbm [thread:$0]  %s1550, 2048, %s7, [#allocation5], 128, 128, 8
    $region49: #{tpu_custom_call.1} parent=1 // pred_fallthru
      _
    // Predicated region
    $region50: #{tpu_custom_call.1} parent=1 // pred_check
      _
    $region51: #{tpu_custom_call.1} parent=1 // pred_check_branch
      %1557 = sbr.rel (0) target = $region53
    $region52: #{tpu_custom_call.1} parent=1 // pred_region
      %1558 = dma.done [#allocation5], 2048
    $region53: #{tpu_custom_call.1} parent=1 // pred_fallthru
      _
    %1559 = vsyncpa [#allocation4], 1
    %1560 = vsyncpa [#allocation7], 1
    %1561 = vsyncpa [#allocation10], 1
    %1562 = vsyncpa [#allocation5], 1

</llo_original>
